<compile_context>
chip_gen: v7x
topology: tpu7x:2x2x1
jax: 0.10.0
libtpu: 0.0.40
codegen_flags: <defaults>
</compile_context>

<pallas_src>
import functools
import math

import jax
import jax.numpy as jnp
from jax.experimental import pallas as pl
from jax.experimental.pallas import tpu as pltpu

EPS = 1e-8                  # matches torch.nn.LayerNorm(..., eps=1e-08)
MM_DTYPE = jnp.bfloat16     # MXU operand dtype (accumulation stays f32)
NEG_INF = -1e30


# ----------------------------- small helpers -------------------------------

def _layernorm(x, g, b):
    mu = jnp.mean(x, axis=-1, keepdims=True)
    var = jnp.mean(jnp.square(x - mu), axis=-1, keepdims=True)
    return (x - mu) * jax.lax.rsqrt(var + EPS) * g + b


def _pick_batch_tile(B, L, target_rows=1024):
    """Largest divisor of B with TB*L <= target_rows, while keeping >= 2 grid steps on
    the parallel (batch-tile) axis so v7x's 2 TensorCores both get work."""
    best = 1
    for cand in range(1, B + 1):
        if B % cand:
            continue
        if cand * L > target_rows:
            continue
        if B >= 2 and B // cand < 2:
            continue
        best = cand
    return best


def _vmem_limit_bytes():
    """VMEM request with headroom: v7x has only 64 MiB per TensorCore (v5e/v6e have
    128 MiB), so never ask for the whole thing."""
    cap = 64 * 1024 * 1024
    try:
        cap = pltpu.get_tpu_info().vmem_capacity_bytes
    except Exception:
        pass
    return min(48 * 1024 * 1024, (cap * 3) // 4)


# ---------------- fused transformer stack + final logits kernel -------------

def _stack_kernel(num_heads,
                  x_ref, mask_ref,
                  aln_g_ref, aln_b_ref,
                  wq_ref, bq_ref, wk_ref, bk_ref, wv_ref, bv_ref,
                  wo_ref, bo_ref,
                  fln_g_ref, fln_b_ref,
                  w1_ref, b1_ref, w2_ref, b2_ref,
                  last_g_ref, last_b_ref, pos_ref, neg_ref,
                  pos_o_ref, neg_o_ref,
                  act_ref):
    j = pl.program_id(1)                      # transformer-block index ("arbitrary")

    # act_ref (VMEM scratch) carries the f32 activation across the block axis.
    @pl.when(j == 0)
    def _():
        act_ref[...] = x_ref[...]

    x3 = act_ref[...]                         # (TB, L, H) f32
    TB, L, H = x3.shape
    hd = wq_ref.shape[-1]

    x2 = x3.reshape(TB * L, H)
    q_in = _layernorm(x2, aln_g_ref[0], aln_b_ref[0])     # Q = LN(x); K,V use raw x

    xb = x2.astype(MM_DTYPE)
    qb = q_in.astype(MM_DTYPE)
    mask = mask_ref[...]                      # (L, L) additive causal bias, resident

    # Per-head projections from pre-split weights: no lane slicing of activations.
    # (num_heads is 1-2 in SASRec; the loop is static.  Scale is folded into wq/bq.)
    mha = None
    for h in range(num_heads):
        q = jnp.dot(qb, wq_ref[0, h], preferred_element_type=jnp.float32) + bq_ref[0, h]
        k = jnp.dot(xb, wk_ref[0, h], preferred_element_type=jnp.float32) + bk_ref[0, h]
        v = jnp.dot(xb, wv_ref[0, h], preferred_element_type=jnp.float32) + bv_ref[0, h]
        q3 = q.reshape(TB, L, hd).astype(MM_DTYPE)
        k3 = k.reshape(TB, L, hd).astype(MM_DTYPE)
        v3 = v.reshape(TB, L, hd).astype(MM_DTYPE)

        s = jnp.einsum("bqd,bkd->bqk", q3, k3, preferred_element_type=jnp.float32)
        s = s + mask                          # additive -1e30 above the diagonal
        s = s - jnp.max(s, axis=-1, keepdims=True)
        p = jnp.exp(s)
        p = p * pl.reciprocal(jnp.sum(p, axis=-1, keepdims=True), approx=True)
        a = jnp.einsum("bqk,bkd->bqd", p.astype(MM_DTYPE), v3,
                       preferred_element_type=jnp.float32)           # (TB, L, hd)
        # Fold this head's context straight into the output projection (no concat).
        part = jnp.dot(a.reshape(TB * L, hd).astype(MM_DTYPE), wo_ref[0, h],
                       preferred_element_type=jnp.float32)
        mha = part if mha is None else mha + part
    mha = mha + bo_ref[0]

    s1 = q_in + mha                           # seqs = Q + dropout(mha) (eval: identity)

    # forward LayerNorm + PointWiseFeedForward (two 1x1 convs == two Linears)
    y = _layernorm(s1, fln_g_ref[0], fln_b_ref[0])
    h1 = jnp.maximum(
        jnp.dot(y.astype(MM_DTYPE), w1_ref[0], preferred_element_type=jnp.float32)
        + b1_ref[0], 0.0)
    h2 = jnp.dot(h1.astype(MM_DTYPE), w2_ref[0], preferred_element_type=jnp.float32) \
        + b2_ref[0]

    out3 = (h2 + y).reshape(TB, L, H)         # residual onto FFN input
    act_ref[...] = out3

    # Fused epilogue: last LayerNorm + pos/neg logits, emitted as lane-dense slabs.
    @pl.when(j == pl.num_programs(1) - 1)
    def _():
        feats = _layernorm(out3, last_g_ref[...], last_b_ref[...])   # (TB, L, H)
        pos_o_ref[...] = jnp.sum(feats * pos_ref[...], axis=-1).reshape(1, 1, TB * L)
        neg_o_ref[...] = jnp.sum(feats * neg_ref[...], axis=-1).reshape(1, 1, TB * L)


def sasrec_blocks_and_logits(x, mask, stacked, pos_e, neg_e, last_g, last_b,
                             num_heads, batch_tile):
    B, L, H = x.shape
    NB = stacked["w1"].shape[0]
    nh = num_heads
    hd = H // nh
    TB = batch_tile
    nbt = B // TB

    act_spec = pl.BlockSpec((TB, L, H), lambda i, j: (i, 0, 0))
    blk_w = pl.BlockSpec((1, H, H), lambda i, j: (j, 0, 0))
    blk_v = pl.BlockSpec((1, 1, H), lambda i, j: (j, 0, 0))
    blk_hw = pl.BlockSpec((1, nh, H, hd), lambda i, j: (j, 0, 0, 0))
    blk_hb = pl.BlockSpec((1, nh, 1, hd), lambda i, j: (j, 0, 0, 0))
    blk_ho = pl.BlockSpec((1, nh, hd, H), lambda i, j: (j, 0, 0, 0))
    const_mask = pl.BlockSpec((L, L), lambda i, j: (0, 0))
    const_vec = pl.BlockSpec((1, H), lambda i, j: (0, 0))
    logit_spec = pl.BlockSpec((1, 1, TB * L), lambda i, j: (i, 0, 0))

    pos_lg, neg_lg = pl.pallas_call(
        functools.partial(_stack_kernel, nh),
        out_shape=(jax.ShapeDtypeStruct((nbt, 1, TB * L), jnp.float32),
                   jax.ShapeDtypeStruct((nbt, 1, TB * L), jnp.float32)),
        grid=(nbt, NB),
        in_specs=[
            act_spec,                              # embedded sequences
            const_mask,                            # additive causal mask (resident)
            blk_v, blk_v,                          # attn LN gamma/beta
            blk_hw, blk_hb,                        # wq (scaled), bq (scaled)
            blk_hw, blk_hb,                        # wk, bk
            blk_hw, blk_hb,                        # wv, bv
            blk_ho, blk_v,                         # wo per-head, bo
            blk_v, blk_v,                          # fwd LN gamma/beta
            blk_w, blk_v, blk_w, blk_v,            # w1_T, b1, w2_T, b2
            const_vec, const_vec,                  # last LN gamma/beta
            act_spec, act_spec,                    # pos_e, neg_e (fetched once per i)
        ],
        out_specs=(logit_spec, logit_spec),
        scratch_shapes=[pltpu.VMEM((TB, L, H), jnp.float32)],   # activation carry
        compiler_params=pltpu.CompilerParams(
            dimension_semantics=("parallel", "arbitrary"),
            vmem_limit_bytes=_vmem_limit_bytes()),
    )(x, mask,
      stacked["aln_g"], stacked["aln_b"],
      stacked["wq"], stacked["bq"], stacked["wk"], stacked["bk"],
      stacked["wv"], stacked["bv"],
      stacked["wo"], stacked["bo"],
      stacked["fln_g"], stacked["fln_b"],
      stacked["w1"], stacked["b1"], stacked["w2"], stacked["b2"],
      last_g, last_b, pos_e, neg_e)

    return pos_lg.reshape(B, L), neg_lg.reshape(B, L)


# ----------------------- host-side weight preprocessing ---------------------

def pack_params(params, num_heads):
    """Stack per-block weights (leading num_blocks dim), pre-transpose matmul weights
    (kernel computes x @ W), pre-split Q/K/V/out-proj per head, fold the 1/sqrt(hd)
    attention scale into wq/bq, and cast matmul weights to bf16."""
    # TODO(synk): for production shapes, zero-pad H (and hd) to a multiple of 128 here
    # so every vreg/MXU tile is full; done at pack time it is free.
    H = params["item_emb"].shape[1]
    hd = H // num_heads
    scale = 1.0 / math.sqrt(hd)

    def stack(fn):
        return jnp.stack([fn(b) for b in params["blocks"]], axis=0)

    def heads_w(w_t):                       # (H, H) [in, out] -> (nh, H, hd)
        return w_t.reshape(H, num_heads, hd).transpose(1, 0, 2)

    def heads_b(bias):                      # (1, H) -> (nh, 1, hd)
        return bias.reshape(1, num_heads, hd).transpose(1, 0, 2)

    return dict(
        aln_g=stack(lambda b: b["aln_g"]),                               # (NB, 1, H)
        aln_b=stack(lambda b: b["aln_b"]),
        wq=stack(lambda b: heads_w(b["in_w"][0:H].T * scale)).astype(MM_DTYPE),
        bq=stack(lambda b: heads_b(b["in_b"][:, 0:H] * scale)),
        wk=stack(lambda b: heads_w(b["in_w"][H:2 * H].T)).astype(MM_DTYPE),
        bk=stack(lambda b: heads_b(b["in_b"][:, H:2 * H])),
        wv=stack(lambda b: heads_w(b["in_w"][2 * H:3 * H].T)).astype(MM_DTYPE),
        bv=stack(lambda b: heads_b(b["in_b"][:, 2 * H:3 * H])),
        wo=stack(lambda b: b["out_w"].T.reshape(num_heads, hd, H)).astype(MM_DTYPE),
        bo=stack(lambda b: b["out_b"]),
        fln_g=stack(lambda b: b["fln_g"]),
        fln_b=stack(lambda b: b["fln_b"]),
        w1=stack(lambda b: b["w1"].T).astype(MM_DTYPE),
        b1=stack(lambda b: b["b1"]),
        w2=stack(lambda b: b["w2"].T).astype(MM_DTYPE),
        b2=stack(lambda b: b["b2"]),
    )


# ------------------------------ full forward -------------------------------

def sasrec_forward(params, stacked, log_seqs, pos_seqs, neg_seqs, num_heads,
                   batch_tile=None):
    item_emb = params["item_emb"]
    pos_emb = params["pos_emb"]
    H = item_emb.shape[1]
    B, L = log_seqs.shape
    if batch_tile is None:
        batch_tile = _pick_batch_tile(B, L)

    # embedding gathers + positional ids (glue, plain JAX)
    seqs = item_emb[log_seqs] * math.sqrt(H)
    poss = jnp.tile(jnp.arange(1, L + 1, dtype=jnp.int32), (B, 1)) * (log_seqs != 0)
    seqs = seqs + pos_emb[poss]
    # emb_dropout: identity in eval mode

    # precomputed additive causal bias (0 below/on diag, -1e30 above)
    mask = jnp.triu(jnp.full((L, L), NEG_INF, jnp.float32), k=1)

    pos_e = item_emb[pos_seqs]
    neg_e = item_emb[neg_seqs]
    return sasrec_blocks_and_logits(seqs.astype(jnp.float32), mask, stacked,
                                    pos_e, neg_e, params["last_g"], params["last_b"],
                                    num_heads, batch_tile)


# --------------------------- pure-JAX reference (f32) -----------------------

def _ref_forward(params, log_seqs, pos_seqs, neg_seqs, num_heads):
    item_emb = params["item_emb"]
    pos_emb = params["pos_emb"]
    H = item_emb.shape[1]
    B, L = log_seqs.shape
    hd = H // num_heads
    scale = 1.0 / math.sqrt(hd)

    seqs = item_emb[log_seqs] * math.sqrt(H)
    poss = jnp.tile(jnp.arange(1, L + 1, dtype=jnp.int32), (B, 1)) * (log_seqs != 0)
    seqs = seqs + pos_emb[poss]

    row = jnp.arange(L)[:, None]
    col = jnp.arange(L)[None, :]
    disallow = col > row

    for blk in params["blocks"]:
        q_in = _layernorm(seqs, blk["aln_g"], blk["aln_b"])
        in_w, in_b = blk["in_w"], blk["in_b"][0]
        q = q_in @ in_w[0:H].T + in_b[0:H]
        k = seqs @ in_w[H:2 * H].T + in_b[H:2 * H]
        v = seqs @ in_w[2 * H:3 * H].T + in_b[2 * H:3 * H]
        heads = []
        for h in range(num_heads):
            qh = q[..., h * hd:(h + 1) * hd] * scale
            kh = k[..., h * hd:(h + 1) * hd]
            vh = v[..., h * hd:(h + 1) * hd]
            s = jnp.einsum("bqd,bkd->bqk", qh, kh)
            s = jnp.where(disallow[None], NEG_INF, s)
            p = jax.nn.softmax(s, axis=-1)
            heads.append(jnp.einsum("bqk,bkd->bqd", p, vh))
        attn = jnp.concatenate(heads, axis=-1)
        mha = attn @ blk["out_w"].T + blk["out_b"][0]
        s1 = q_in + mha
        y = _layernorm(s1, blk["fln_g"], blk["fln_b"])
        h1 = jnp.maximum(y @ blk["w1"].T + blk["b1"][0], 0.0)
        h2 = h1 @ blk["w2"].T + blk["b2"][0]
        seqs = h2 + y

    feats = _layernorm(seqs, params["last_g"], params["last_b"])
    pos_logits = jnp.sum(feats * item_emb[pos_seqs], axis=-1)
    neg_logits = jnp.sum(feats * item_emb[neg_seqs], axis=-1)
    return pos_logits, neg_logits


# ----------------------------- parameter init -------------------------------

def init_params(key, item_num, maxlen, H, num_blocks):
    k_item, k_pos, k_blk = jax.random.split(key, 3)
    item_emb = 0.02 * jax.random.normal(k_item, (item_num + 1, H), jnp.float32)
    item_emb = item_emb.at[0].set(0.0)            # padding_idx=0
    pos_emb = 0.02 * jax.random.normal(k_pos, (maxlen + 1, H), jnp.float32)
    pos_emb = pos_emb.at[0].set(0.0)              # padding_idx=0

    blocks = []
    for i in range(num_blocks):
        bk = jax.random.split(jax.random.fold_in(k_blk, i), 8)
        blocks.append(dict(
            aln_g=jnp.ones((1, H), jnp.float32),
            aln_b=jnp.zeros((1, H), jnp.float32),
            in_w=0.02 * jax.random.normal(bk[0], (3 * H, H), jnp.float32),
            in_b=0.01 * jax.random.normal(bk[1], (1, 3 * H), jnp.float32),
            out_w=0.02 * jax.random.normal(bk[2], (H, H), jnp.float32),
            out_b=0.01 * jax.random.normal(bk[3], (1, H), jnp.float32),
            fln_g=jnp.ones((1, H), jnp.float32),
            fln_b=jnp.zeros((1, H), jnp.float32),
            w1=0.02 * jax.random.normal(bk[4], (H, H), jnp.float32),
            b1=0.01 * jax.random.normal(bk[5], (1, H), jnp.float32),
            w2=0.02 * jax.random.normal(bk[6], (H, H), jnp.float32),
            b2=0.01 * jax.random.normal(bk[7], (1, H), jnp.float32),
        ))

    return dict(item_emb=item_emb, pos_emb=pos_emb, blocks=blocks,
                last_g=jnp.ones((1, H), jnp.float32),
                last_b=jnp.zeros((1, H), jnp.float32))


# ----------------------------------- main ------------------------------------

if __name__ == "__main__":
    B, L, H = 2, 8, 32          # batch, maxlen, hidden_units
    num_heads, num_blocks = 2, 2
    item_num = 50

    key = jax.random.PRNGKey(0)
    k_params, k_log, k_pos, k_neg = jax.random.split(key, 4)
    params = init_params(k_params, item_num, L, H, num_blocks)
    stacked = pack_params(params, num_heads)

    log_seqs = jax.random.randint(k_log, (B, L), 0, item_num + 1, jnp.int32)
    log_seqs = log_seqs.at[0, :3].set(0)          # exercise padding (item 0)
    pos_seqs = jax.random.randint(k_pos, (B, L), 1, item_num + 1, jnp.int32)
    neg_seqs = jax.random.randint(k_neg, (B, L), 1, item_num + 1, jnp.int32)

    fwd = jax.jit(functools.partial(sasrec_forward, num_heads=num_heads))
    pos_logits, neg_logits = fwd(params, stacked, log_seqs, pos_seqs, neg_seqs)
    jax.block_until_ready((pos_logits, neg_logits))

    # Compare against the f32 pure-JAX reference (kernel uses bf16 MXU operands and an
    # approx reciprocal in the softmax, so allow ~1e-2 slack; measured error ~1e-3).
    ref_pos, ref_neg = _ref_forward(params, log_seqs, pos_seqs, neg_seqs, num_heads)
    assert jnp.allclose(pos_logits, ref_pos, atol=1e-2, rtol=1e-2)
    assert jnp.allclose(neg_logits, ref_neg, atol=1e-2, rtol=1e-2)

    print("KERNEL_OK")
</pallas_src>

<mosaic_0001>
module attributes {stable_mosaic.version = 11 : i64} {
  func.func @_stack_kernel(%arg0: i32, %arg1: i32, %arg2: memref<1x8x32xf32, #tpu.memory_space<vmem>>, %arg3: memref<8x8xf32, #tpu.memory_space<vmem>>, %arg4: memref<1x1x32xf32, #tpu.memory_space<vmem>>, %arg5: memref<1x1x32xf32, #tpu.memory_space<vmem>>, %arg6: memref<1x2x32x16xbf16, #tpu.memory_space<vmem>>, %arg7: memref<1x2x1x16xf32, #tpu.memory_space<vmem>>, %arg8: memref<1x2x32x16xbf16, #tpu.memory_space<vmem>>, %arg9: memref<1x2x1x16xf32, #tpu.memory_space<vmem>>, %arg10: memref<1x2x32x16xbf16, #tpu.memory_space<vmem>>, %arg11: memref<1x2x1x16xf32, #tpu.memory_space<vmem>>, %arg12: memref<1x2x16x32xbf16, #tpu.memory_space<vmem>>, %arg13: memref<1x1x32xf32, #tpu.memory_space<vmem>>, %arg14: memref<1x1x32xf32, #tpu.memory_space<vmem>>, %arg15: memref<1x1x32xf32, #tpu.memory_space<vmem>>, %arg16: memref<1x32x32xbf16, #tpu.memory_space<vmem>>, %arg17: memref<1x1x32xf32, #tpu.memory_space<vmem>>, %arg18: memref<1x32x32xbf16, #tpu.memory_space<vmem>>, %arg19: memref<1x1x32xf32, #tpu.memory_space<vmem>>, %arg20: memref<1x32xf32, #tpu.memory_space<vmem>>, %arg21: memref<1x32xf32, #tpu.memory_space<vmem>>, %arg22: memref<1x8x32xf32, #tpu.memory_space<vmem>>, %arg23: memref<1x8x32xf32, #tpu.memory_space<vmem>>, %arg24: memref<1x1x8xf32, #tpu.memory_space<vmem>>, %arg25: memref<1x1x8xf32, #tpu.memory_space<vmem>>, %arg26: memref<1x8x32xf32, #tpu.memory_space<vmem>>) attributes {dimension_semantics = [#tpu.dimension_semantics<parallel>, #tpu.dimension_semantics<arbitrary>], iteration_bounds = array<i64: 2, 2>, scalar_prefetch = 0 : i64, scratch_operands = 1 : i64, tpu.core_type = #tpu.core_type<tc>, window_params = [{transform_indices = @transform_0, window_bounds = array<i64: 1, 8, 32>}, {pipeline_mode = #tpu.pipeline_mode<synchronous>, transform_indices = @transform_1, window_bounds = array<i64: 8, 8>}, {transform_indices = @transform_2, window_bounds = array<i64: 1, 1, 32>}, {transform_indices = @transform_3, window_bounds = array<i64: 1, 1, 32>}, {transform_indices = @transform_4, window_bounds = array<i64: 1, 2, 32, 16>}, {transform_indices = @transform_5, window_bounds = array<i64: 1, 2, 1, 16>}, {transform_indices = @transform_6, window_bounds = array<i64: 1, 2, 32, 16>}, {transform_indices = @transform_7, window_bounds = array<i64: 1, 2, 1, 16>}, {transform_indices = @transform_8, window_bounds = array<i64: 1, 2, 32, 16>}, {transform_indices = @transform_9, window_bounds = array<i64: 1, 2, 1, 16>}, {transform_indices = @transform_10, window_bounds = array<i64: 1, 2, 16, 32>}, {transform_indices = @transform_11, window_bounds = array<i64: 1, 1, 32>}, {transform_indices = @transform_12, window_bounds = array<i64: 1, 1, 32>}, {transform_indices = @transform_13, window_bounds = array<i64: 1, 1, 32>}, {transform_indices = @transform_14, window_bounds = array<i64: 1, 32, 32>}, {transform_indices = @transform_15, window_bounds = array<i64: 1, 1, 32>}, {transform_indices = @transform_16, window_bounds = array<i64: 1, 32, 32>}, {transform_indices = @transform_17, window_bounds = array<i64: 1, 1, 32>}, {pipeline_mode = #tpu.pipeline_mode<synchronous>, transform_indices = @transform_18, window_bounds = array<i64: 1, 32>}, {pipeline_mode = #tpu.pipeline_mode<synchronous>, transform_indices = @transform_19, window_bounds = array<i64: 1, 32>}, {transform_indices = @transform_20, window_bounds = array<i64: 1, 8, 32>}, {transform_indices = @transform_21, window_bounds = array<i64: 1, 8, 32>}, {transform_indices = @transform_22, window_bounds = array<i64: 1, 1, 8>}, {transform_indices = @transform_23, window_bounds = array<i64: 1, 1, 8>}]} {
    %c0_i32 = arith.constant 0 : i32
    %0 = arith.cmpi eq, %arg1, %c0_i32 : i32
    %1 = arith.extui %0 : i1 to i32
    %c0_i32_0 = arith.constant 0 : i32
    %2 = arith.cmpi ne, %1, %c0_i32_0 : i32
    scf.if %2 {
      %c0_119 = arith.constant 0 : index
      %c0_120 = arith.constant 0 : index
      %c0_121 = arith.constant 0 : index
      %184 = vector.load %arg2[%c0_119, %c0_120, %c0_121] : memref<1x8x32xf32, #tpu.memory_space<vmem>>, vector<1x8x32xf32>
      %c0_122 = arith.constant 0 : index
      %c0_123 = arith.constant 0 : index
      %c0_124 = arith.constant 0 : index
      %185 = vector.load %arg26[%c0_122, %c0_123, %c0_124] : memref<1x8x32xf32, #tpu.memory_space<vmem>>, vector<1x8x32xf32>
      tpu.vector_store %arg26[%c0_122, %c0_123, %c0_124], %184 {strides = array<i32>} : memref<1x8x32xf32, #tpu.memory_space<vmem>>, vector<1x8x32xf32>,
    } else {
    }
    %c0 = arith.constant 0 : index
    %c0_1 = arith.constant 0 : index
    %c0_2 = arith.constant 0 : index
    %3 = vector.load %arg26[%c0, %c0_1, %c0_2] : memref<1x8x32xf32, #tpu.memory_space<vmem>>, vector<1x8x32xf32>
    %4 = vector.shape_cast %3 : vector<1x8x32xf32> to vector<8x32xf32>
    %c0_3 = arith.constant 0 : index
    %c0_4 = arith.constant 0 : index
    %c0_5 = arith.constant 0 : index
    %5 = vector.load %arg4[%c0_3, %c0_4, %c0_5] : memref<1x1x32xf32, #tpu.memory_space<vmem>>, vector<1x1x32xf32>
    %6 = vector.shape_cast %5 : vector<1x1x32xf32> to vector<1x32xf32>
    %c0_6 = arith.constant 0 : index
    %c0_7 = arith.constant 0 : index
    %c0_8 = arith.constant 0 : index
    %7 = vector.load %arg5[%c0_6, %c0_7, %c0_8] : memref<1x1x32xf32, #tpu.memory_space<vmem>>, vector<1x1x32xf32>
    %8 = vector.shape_cast %7 : vector<1x1x32xf32> to vector<1x32xf32>
    %cst = arith.constant dense<0.000000e+00> : vector<8xf32>
    %9 = vector.multi_reduction <add>, %4, %cst [1] : vector<8x32xf32> to vector<8xf32>
    %10 = vector.shape_cast %9 : vector<8xf32> to vector<8x1xf32>
    %cst_9 = arith.constant 3.200000e+01 : f32
    %11 = vector.broadcast %cst_9 : f32 to vector<8x1xf32>
    %12 = arith.divf %10, %11 : vector<8x1xf32>
    %13 = vector.broadcast %12 : vector<8x1xf32> to vector<8x32xf32>
    %14 = arith.subf %4, %13 : vector<8x32xf32>
    %15 = arith.mulf %14, %14 : vector<8x32xf32>
    %cst_10 = arith.constant dense<0.000000e+00> : vector<8xf32>
    %16 = vector.multi_reduction <add>, %15, %cst_10 [1] : vector<8x32xf32> to vector<8xf32>
    %17 = vector.shape_cast %16 : vector<8xf32> to vector<8x1xf32>
    %cst_11 = arith.constant 3.200000e+01 : f32
    %18 = vector.broadcast %cst_11 : f32 to vector<8x1xf32>
    %19 = arith.divf %17, %18 : vector<8x1xf32>
    %20 = vector.broadcast %12 : vector<8x1xf32> to vector<8x32xf32>
    %21 = arith.subf %4, %20 : vector<8x32xf32>
    %cst_12 = arith.constant 9.99999993E-9 : f32
    %22 = vector.broadcast %cst_12 : f32 to vector<8x1xf32>
    %23 = arith.addf %19, %22 : vector<8x1xf32>
    %24 = math.rsqrt %23 : vector<8x1xf32>
    %25 = vector.broadcast %24 : vector<8x1xf32> to vector<8x32xf32>
    %26 = arith.mulf %21, %25 : vector<8x32xf32>
    %27 = vector.broadcast %6 : vector<1x32xf32> to vector<8x32xf32>
    %28 = arith.mulf %26, %27 : vector<8x32xf32>
    %29 = vector.broadcast %8 : vector<1x32xf32> to vector<8x32xf32>
    %30 = arith.addf %28, %29 : vector<8x32xf32>
    %31 = arith.truncf %4 : vector<8x32xf32> to vector<8x32xbf16>
    %32 = arith.truncf %30 : vector<8x32xf32> to vector<8x32xbf16>
    %c0_13 = arith.constant 0 : index
    %c0_14 = arith.constant 0 : index
    %33 = vector.load %arg3[%c0_13, %c0_14] : memref<8x8xf32, #tpu.memory_space<vmem>>, vector<8x8xf32>
    %c0_15 = arith.constant 0 : index
    %c0_16 = arith.constant 0 : index
    %c0_17 = arith.constant 0 : index
    %c0_18 = arith.constant 0 : index
    %34 = vector.load %arg6[%c0_15, %c0_16, %c0_17, %c0_18] : memref<1x2x32x16xbf16, #tpu.memory_space<vmem>>, vector<1x1x32x16xbf16>
    %35 = vector.shape_cast %34 : vector<1x1x32x16xbf16> to vector<32x16xbf16>
    %cst_19 = arith.constant dense<0.000000e+00> : vector<8x16xf32>
    %36 = tpu.matmul %32, %35, %cst_19 {dimension_numbers = #tpu.dot_dimension_numbers<[1], [0], [0], [1], [0, 0, 1, 1], [], []>} : vector<8x32xbf16>, vector<32x16xbf16>, vector<8x16xf32> -> vector<8x16xf32>
    %c0_20 = arith.constant 0 : index
    %c0_21 = arith.constant 0 : index
    %c0_22 = arith.constant 0 : index
    %c0_23 = arith.constant 0 : index
    %37 = vector.load %arg7[%c0_20, %c0_21, %c0_22, %c0_23] : memref<1x2x1x16xf32, #tpu.memory_space<vmem>>, vector<1x1x1x16xf32>
    %38 = vector.shape_cast %37 : vector<1x1x1x16xf32> to vector<1x16xf32>
    %39 = vector.broadcast %38 : vector<1x16xf32> to vector<8x16xf32>
    %40 = arith.addf %36, %39 : vector<8x16xf32>
    %c0_24 = arith.constant 0 : index
    %c0_25 = arith.constant 0 : index
    %c0_26 = arith.constant 0 : index
    %c0_27 = arith.constant 0 : index
    %41 = vector.load %arg8[%c0_24, %c0_25, %c0_26, %c0_27] : memref<1x2x32x16xbf16, #tpu.memory_space<vmem>>, vector<1x1x32x16xbf16>
    %42 = vector.shape_cast %41 : vector<1x1x32x16xbf16> to vector<32x16xbf16>
    %cst_28 = arith.constant dense<0.000000e+00> : vector<8x16xf32>
    %43 = tpu.matmul %31, %42, %cst_28 {dimension_numbers = #tpu.dot_dimension_numbers<[1], [0], [0], [1], [0, 0, 1, 1], [], []>} : vector<8x32xbf16>, vector<32x16xbf16>, vector<8x16xf32> -> vector<8x16xf32>
    %c0_29 = arith.constant 0 : index
    %c0_30 = arith.constant 0 : index
    %c0_31 = arith.constant 0 : index
    %c0_32 = arith.constant 0 : index
    %44 = vector.load %arg9[%c0_29, %c0_30, %c0_31, %c0_32] : memref<1x2x1x16xf32, #tpu.memory_space<vmem>>, vector<1x1x1x16xf32>
    %45 = vector.shape_cast %44 : vector<1x1x1x16xf32> to vector<1x16xf32>
    %46 = vector.broadcast %45 : vector<1x16xf32> to vector<8x16xf32>
    %47 = arith.addf %43, %46 : vector<8x16xf32>
    %c0_33 = arith.constant 0 : index
    %c0_34 = arith.constant 0 : index
    %c0_35 = arith.constant 0 : index
    %c0_36 = arith.constant 0 : index
    %48 = vector.load %arg10[%c0_33, %c0_34, %c0_35, %c0_36] : memref<1x2x32x16xbf16, #tpu.memory_space<vmem>>, vector<1x1x32x16xbf16>
    %49 = vector.shape_cast %48 : vector<1x1x32x16xbf16> to vector<32x16xbf16>
    %cst_37 = arith.constant dense<0.000000e+00> : vector<8x16xf32>
    %50 = tpu.matmul %31, %49, %cst_37 {dimension_numbers = #tpu.dot_dimension_numbers<[1], [0], [0], [1], [0, 0, 1, 1], [], []>} : vector<8x32xbf16>, vector<32x16xbf16>, vector<8x16xf32> -> vector<8x16xf32>
    %c0_38 = arith.constant 0 : index
    %c0_39 = arith.constant 0 : index
    %c0_40 = arith.constant 0 : index
    %c0_41 = arith.constant 0 : index
    %51 = vector.load %arg11[%c0_38, %c0_39, %c0_40, %c0_41] : memref<1x2x1x16xf32, #tpu.memory_space<vmem>>, vector<1x1x1x16xf32>
    %52 = vector.shape_cast %51 : vector<1x1x1x16xf32> to vector<1x16xf32>
    %53 = vector.broadcast %52 : vector<1x16xf32> to vector<8x16xf32>
    %54 = arith.addf %50, %53 : vector<8x16xf32>
    %55 = vector.shape_cast %40 : vector<8x16xf32> to vector<1x8x16xf32>
    %56 = arith.truncf %55 : vector<1x8x16xf32> to vector<1x8x16xbf16>
    %57 = vector.shape_cast %47 : vector<8x16xf32> to vector<1x8x16xf32>
    %58 = arith.truncf %57 : vector<1x8x16xf32> to vector<1x8x16xbf16>
    %59 = vector.shape_cast %54 : vector<8x16xf32> to vector<1x8x16xf32>
    %60 = arith.truncf %59 : vector<1x8x16xf32> to vector<1x8x16xbf16>
    "tpu.trace_start"() <{level = 10 : i32, message = "bqd,bkd->bqk"}> : () -> ()
    %cst_42 = arith.constant dense<0.000000e+00> : vector<1x8x8xf32>
    %61 = tpu.matmul %56, %58, %cst_42 {dimension_numbers = #tpu.dot_dimension_numbers<[2], [2], [1], [1], [0, 0, 0, 1, 1, 1], [0], [0]>} : vector<1x8x16xbf16>, vector<1x8x16xbf16>, vector<1x8x8xf32> -> vector<1x8x8xf32>
    "tpu.trace_stop"() : () -> ()
    %62 = vector.shape_cast %33 : vector<8x8xf32> to vector<1x8x8xf32>
    %63 = arith.addf %61, %62 : vector<1x8x8xf32>
    %cst_43 = arith.constant dense<0xFF800000> : vector<1x8xf32>
    %64 = vector.multi_reduction <maximumf>, %63, %cst_43 [2] : vector<1x8x8xf32> to vector<1x8xf32>
    %65 = vector.shape_cast %64 : vector<1x8xf32> to vector<1x8x1xf32>
    %66 = vector.broadcast %65 : vector<1x8x1xf32> to vector<1x8x8xf32>
    %67 = arith.subf %63, %66 : vector<1x8x8xf32>
    %68 = math.exp %67 : vector<1x8x8xf32>
    %cst_44 = arith.constant dense<0.000000e+00> : vector<1x8xf32>
    %69 = vector.multi_reduction <add>, %68, %cst_44 [2] : vector<1x8x8xf32> to vector<1x8xf32>
    %70 = vector.shape_cast %69 : vector<1x8xf32> to vector<1x8x1xf32>
    %71 = tpu.reciprocal %70 {approx = true} : vector<1x8x1xf32> -> vector<1x8x1xf32>
    %72 = vector.broadcast %71 : vector<1x8x1xf32> to vector<1x8x8xf32>
    %73 = arith.mulf %68, %72 : vector<1x8x8xf32>
    %74 = arith.truncf %73 : vector<1x8x8xf32> to vector<1x8x8xbf16>
    "tpu.trace_start"() <{level = 10 : i32, message = "bqk,bkd->bqd"}> : () -> ()
    %cst_45 = arith.constant dense<0.000000e+00> : vector<1x8x16xf32>
    %75 = tpu.matmul %74, %60, %cst_45 {dimension_numbers = #tpu.dot_dimension_numbers<[2], [1], [1], [2], [0, 0, 0, 1, 1, 2], [0], [0]>} : vector<1x8x8xbf16>, vector<1x8x16xbf16>, vector<1x8x16xf32> -> vector<1x8x16xf32>
    "tpu.trace_stop"() : () -> ()
    %76 = vector.shape_cast %75 : vector<1x8x16xf32> to vector<8x16xf32>
    %77 = arith.truncf %76 : vector<8x16xf32> to vector<8x16xbf16>
    %c0_46 = arith.constant 0 : index
    %c0_47 = arith.constant 0 : index
    %c0_48 = arith.constant 0 : index
    %c0_49 = arith.constant 0 : index
    %78 = vector.load %arg12[%c0_46, %c0_47, %c0_48, %c0_49] : memref<1x2x16x32xbf16, #tpu.memory_space<vmem>>, vector<1x1x16x32xbf16>
    %79 = vector.shape_cast %78 : vector<1x1x16x32xbf16> to vector<16x32xbf16>
    %cst_50 = arith.constant dense<0.000000e+00> : vector<8x32xf32>
    %80 = tpu.matmul %77, %79, %cst_50 {dimension_numbers = #tpu.dot_dimension_numbers<[1], [0], [0], [1], [0, 0, 1, 1], [], []>} : vector<8x16xbf16>, vector<16x32xbf16>, vector<8x32xf32> -> vector<8x32xf32>
    %c0_51 = arith.constant 0 : index
    %c1 = arith.constant 1 : index
    %c0_52 = arith.constant 0 : index
    %c0_53 = arith.constant 0 : index
    %81 = vector.load %arg6[%c0_51, %c1, %c0_52, %c0_53] : memref<1x2x32x16xbf16, #tpu.memory_space<vmem>>, vector<1x1x32x16xbf16>
    %82 = vector.shape_cast %81 : vector<1x1x32x16xbf16> to vector<32x16xbf16>
    %cst_54 = arith.constant dense<0.000000e+00> : vector<8x16xf32>
    %83 = tpu.matmul %32, %82, %cst_54 {dimension_numbers = #tpu.dot_dimension_numbers<[1], [0], [0], [1], [0, 0, 1, 1], [], []>} : vector<8x32xbf16>, vector<32x16xbf16>, vector<8x16xf32> -> vector<8x16xf32>
    %c0_55 = arith.constant 0 : index
    %c1_56 = arith.constant 1 : index
    %c0_57 = arith.constant 0 : index
    %c0_58 = arith.constant 0 : index
    %84 = vector.load %arg7[%c0_55, %c1_56, %c0_57, %c0_58] : memref<1x2x1x16xf32, #tpu.memory_space<vmem>>, vector<1x1x1x16xf32>
    %85 = vector.shape_cast %84 : vector<1x1x1x16xf32> to vector<1x16xf32>
    %86 = vector.broadcast %85 : vector<1x16xf32> to vector<8x16xf32>
    %87 = arith.addf %83, %86 : vector<8x16xf32>
    %c0_59 = arith.constant 0 : index
    %c1_60 = arith.constant 1 : index
    %c0_61 = arith.constant 0 : index
    %c0_62 = arith.constant 0 : index
    %88 = vector.load %arg8[%c0_59, %c1_60, %c0_61, %c0_62] : memref<1x2x32x16xbf16, #tpu.memory_space<vmem>>, vector<1x1x32x16xbf16>
    %89 = vector.shape_cast %88 : vector<1x1x32x16xbf16> to vector<32x16xbf16>
    %cst_63 = arith.constant dense<0.000000e+00> : vector<8x16xf32>
    %90 = tpu.matmul %31, %89, %cst_63 {dimension_numbers = #tpu.dot_dimension_numbers<[1], [0], [0], [1], [0, 0, 1, 1], [], []>} : vector<8x32xbf16>, vector<32x16xbf16>, vector<8x16xf32> -> vector<8x16xf32>
    %c0_64 = arith.constant 0 : index
    %c1_65 = arith.constant 1 : index
    %c0_66 = arith.constant 0 : index
    %c0_67 = arith.constant 0 : index
    %91 = vector.load %arg9[%c0_64, %c1_65, %c0_66, %c0_67] : memref<1x2x1x16xf32, #tpu.memory_space<vmem>>, vector<1x1x1x16xf32>
    %92 = vector.shape_cast %91 : vector<1x1x1x16xf32> to vector<1x16xf32>
    %93 = vector.broadcast %92 : vector<1x16xf32> to vector<8x16xf32>
    %94 = arith.addf %90, %93 : vector<8x16xf32>
    %c0_68 = arith.constant 0 : index
    %c1_69 = arith.constant 1 : index
    %c0_70 = arith.constant 0 : index
    %c0_71 = arith.constant 0 : index
    %95 = vector.load %arg10[%c0_68, %c1_69, %c0_70, %c0_71] : memref<1x2x32x16xbf16, #tpu.memory_space<vmem>>, vector<1x1x32x16xbf16>
    %96 = vector.shape_cast %95 : vector<1x1x32x16xbf16> to vector<32x16xbf16>
    %cst_72 = arith.constant dense<0.000000e+00> : vector<8x16xf32>
    %97 = tpu.matmul %31, %96, %cst_72 {dimension_numbers = #tpu.dot_dimension_numbers<[1], [0], [0], [1], [0, 0, 1, 1], [], []>} : vector<8x32xbf16>, vector<32x16xbf16>, vector<8x16xf32> -> vector<8x16xf32>
    %c0_73 = arith.constant 0 : index
    %c1_74 = arith.constant 1 : index
    %c0_75 = arith.constant 0 : index
    %c0_76 = arith.constant 0 : index
    %98 = vector.load %arg11[%c0_73, %c1_74, %c0_75, %c0_76] : memref<1x2x1x16xf32, #tpu.memory_space<vmem>>, vector<1x1x1x16xf32>
    %99 = vector.shape_cast %98 : vector<1x1x1x16xf32> to vector<1x16xf32>
    %100 = vector.broadcast %99 : vector<1x16xf32> to vector<8x16xf32>
    %101 = arith.addf %97, %100 : vector<8x16xf32>
    %102 = vector.shape_cast %87 : vector<8x16xf32> to vector<1x8x16xf32>
    %103 = arith.truncf %102 : vector<1x8x16xf32> to vector<1x8x16xbf16>
    %104 = vector.shape_cast %94 : vector<8x16xf32> to vector<1x8x16xf32>
    %105 = arith.truncf %104 : vector<1x8x16xf32> to vector<1x8x16xbf16>
    %106 = vector.shape_cast %101 : vector<8x16xf32> to vector<1x8x16xf32>
    %107 = arith.truncf %106 : vector<1x8x16xf32> to vector<1x8x16xbf16>
    "tpu.trace_start"() <{level = 10 : i32, message = "bqd,bkd->bqk"}> : () -> ()
    %cst_77 = arith.constant dense<0.000000e+00> : vector<1x8x8xf32>
    %108 = tpu.matmul %103, %105, %cst_77 {dimension_numbers = #tpu.dot_dimension_numbers<[2], [2], [1], [1], [0, 0, 0, 1, 1, 1], [0], [0]>} : vector<1x8x16xbf16>, vector<1x8x16xbf16>, vector<1x8x8xf32> -> vector<1x8x8xf32>
    "tpu.trace_stop"() : () -> ()
    %109 = vector.shape_cast %33 : vector<8x8xf32> to vector<1x8x8xf32>
    %110 = arith.addf %108, %109 : vector<1x8x8xf32>
    %cst_78 = arith.constant dense<0xFF800000> : vector<1x8xf32>
    %111 = vector.multi_reduction <maximumf>, %110, %cst_78 [2] : vector<1x8x8xf32> to vector<1x8xf32>
    %112 = vector.shape_cast %111 : vector<1x8xf32> to vector<1x8x1xf32>
    %113 = vector.broadcast %112 : vector<1x8x1xf32> to vector<1x8x8xf32>
    %114 = arith.subf %110, %113 : vector<1x8x8xf32>
    %115 = math.exp %114 : vector<1x8x8xf32>
    %cst_79 = arith.constant dense<0.000000e+00> : vector<1x8xf32>
    %116 = vector.multi_reduction <add>, %115, %cst_79 [2] : vector<1x8x8xf32> to vector<1x8xf32>
    %117 = vector.shape_cast %116 : vector<1x8xf32> to vector<1x8x1xf32>
    %118 = tpu.reciprocal %117 {approx = true} : vector<1x8x1xf32> -> vector<1x8x1xf32>
    %119 = vector.broadcast %118 : vector<1x8x1xf32> to vector<1x8x8xf32>
    %120 = arith.mulf %115, %119 : vector<1x8x8xf32>
    %121 = arith.truncf %120 : vector<1x8x8xf32> to vector<1x8x8xbf16>
    "tpu.trace_start"() <{level = 10 : i32, message = "bqk,bkd->bqd"}> : () -> ()
    %cst_80 = arith.constant dense<0.000000e+00> : vector<1x8x16xf32>
    %122 = tpu.matmul %121, %107, %cst_80 {dimension_numbers = #tpu.dot_dimension_numbers<[2], [1], [1], [2], [0, 0, 0, 1, 1, 2], [0], [0]>} : vector<1x8x8xbf16>, vector<1x8x16xbf16>, vector<1x8x16xf32> -> vector<1x8x16xf32>
    "tpu.trace_stop"() : () -> ()
    %123 = vector.shape_cast %122 : vector<1x8x16xf32> to vector<8x16xf32>
    %124 = arith.truncf %123 : vector<8x16xf32> to vector<8x16xbf16>
    %c0_81 = arith.constant 0 : index
    %c1_82 = arith.constant 1 : index
    %c0_83 = arith.constant 0 : index
    %c0_84 = arith.constant 0 : index
    %125 = vector.load %arg12[%c0_81, %c1_82, %c0_83, %c0_84] : memref<1x2x16x32xbf16, #tpu.memory_space<vmem>>, vector<1x1x16x32xbf16>
    %126 = vector.shape_cast %125 : vector<1x1x16x32xbf16> to vector<16x32xbf16>
    %cst_85 = arith.constant dense<0.000000e+00> : vector<8x32xf32>
    %127 = tpu.matmul %124, %126, %cst_85 {dimension_numbers = #tpu.dot_dimension_numbers<[1], [0], [0], [1], [0, 0, 1, 1], [], []>} : vector<8x16xbf16>, vector<16x32xbf16>, vector<8x32xf32> -> vector<8x32xf32>
    %128 = arith.addf %80, %127 : vector<8x32xf32>
    %c0_86 = arith.constant 0 : index
    %c0_87 = arith.constant 0 : index
    %c0_88 = arith.constant 0 : index
    %129 = vector.load %arg13[%c0_86, %c0_87, %c0_88] : memref<1x1x32xf32, #tpu.memory_space<vmem>>, vector<1x1x32xf32>
    %130 = vector.shape_cast %129 : vector<1x1x32xf32> to vector<1x32xf32>
    %131 = vector.broadcast %130 : vector<1x32xf32> to vector<8x32xf32>
    %132 = arith.addf %128, %131 : vector<8x32xf32>
    %133 = arith.addf %30, %132 : vector<8x32xf32>
    %c0_89 = arith.constant 0 : index
    %c0_90 = arith.constant 0 : index
    %c0_91 = arith.constant 0 : index
    %134 = vector.load %arg14[%c0_89, %c0_90, %c0_91] : memref<1x1x32xf32, #tpu.memory_space<vmem>>, vector<1x1x32xf32>
    %135 = vector.shape_cast %134 : vector<1x1x32xf32> to vector<1x32xf32>
    %c0_92 = arith.constant 0 : index
    %c0_93 = arith.constant 0 : index
    %c0_94 = arith.constant 0 : index
    %136 = vector.load %arg15[%c0_92, %c0_93, %c0_94] : memref<1x1x32xf32, #tpu.memory_space<vmem>>, vector<1x1x32xf32>
    %137 = vector.shape_cast %136 : vector<1x1x32xf32> to vector<1x32xf32>
    %cst_95 = arith.constant dense<0.000000e+00> : vector<8xf32>
    %138 = vector.multi_reduction <add>, %133, %cst_95 [1] : vector<8x32xf32> to vector<8xf32>
    %139 = vector.shape_cast %138 : vector<8xf32> to vector<8x1xf32>
    %cst_96 = arith.constant 3.200000e+01 : f32
    %140 = vector.broadcast %cst_96 : f32 to vector<8x1xf32>
    %141 = arith.divf %139, %140 : vector<8x1xf32>
    %142 = vector.broadcast %141 : vector<8x1xf32> to vector<8x32xf32>
    %143 = arith.subf %133, %142 : vector<8x32xf32>
    %144 = arith.mulf %143, %143 : vector<8x32xf32>
    %cst_97 = arith.constant dense<0.000000e+00> : vector<8xf32>
    %145 = vector.multi_reduction <add>, %144, %cst_97 [1] : vector<8x32xf32> to vector<8xf32>
    %146 = vector.shape_cast %145 : vector<8xf32> to vector<8x1xf32>
    %cst_98 = arith.constant 3.200000e+01 : f32
    %147 = vector.broadcast %cst_98 : f32 to vector<8x1xf32>
    %148 = arith.divf %146, %147 : vector<8x1xf32>
    %149 = vector.broadcast %141 : vector<8x1xf32> to vector<8x32xf32>
    %150 = arith.subf %133, %149 : vector<8x32xf32>
    %cst_99 = arith.constant 9.99999993E-9 : f32
    %151 = vector.broadcast %cst_99 : f32 to vector<8x1xf32>
    %152 = arith.addf %148, %151 : vector<8x1xf32>
    %153 = math.rsqrt %152 : vector<8x1xf32>
    %154 = vector.broadcast %153 : vector<8x1xf32> to vector<8x32xf32>
    %155 = arith.mulf %150, %154 : vector<8x32xf32>
    %156 = vector.broadcast %135 : vector<1x32xf32> to vector<8x32xf32>
    %157 = arith.mulf %155, %156 : vector<8x32xf32>
    %158 = vector.broadcast %137 : vector<1x32xf32> to vector<8x32xf32>
    %159 = arith.addf %157, %158 : vector<8x32xf32>
    %160 = arith.truncf %159 : vector<8x32xf32> to vector<8x32xbf16>
    %c0_100 = arith.constant 0 : index
    %c0_101 = arith.constant 0 : index
    %c0_102 = arith.constant 0 : index
    %161 = vector.load %arg16[%c0_100, %c0_101, %c0_102] : memref<1x32x32xbf16, #tpu.memory_space<vmem>>, vector<1x32x32xbf16>
    %162 = vector.shape_cast %161 : vector<1x32x32xbf16> to vector<32x32xbf16>
    %cst_103 = arith.constant dense<0.000000e+00> : vector<8x32xf32>
    %163 = tpu.matmul %160, %162, %cst_103 {dimension_numbers = #tpu.dot_dimension_numbers<[1], [0], [0], [1], [0, 0, 1, 1], [], []>} : vector<8x32xbf16>, vector<32x32xbf16>, vector<8x32xf32> -> vector<8x32xf32>
    %c0_104 = arith.constant 0 : index
    %c0_105 = arith.constant 0 : index
    %c0_106 = arith.constant 0 : index
    %164 = vector.load %arg17[%c0_104, %c0_105, %c0_106] : memref<1x1x32xf32, #tpu.memory_space<vmem>>, vector<1x1x32xf32>
    %165 = vector.shape_cast %164 : vector<1x1x32xf32> to vector<1x32xf32>
    %166 = vector.broadcast %165 : vector<1x32xf32> to vector<8x32xf32>
    %167 = arith.addf %163, %166 : vector<8x32xf32>
    %cst_107 = arith.constant 0.000000e+00 : f32
    %168 = vector.broadcast %cst_107 : f32 to vector<8x32xf32>
    %169 = arith.maximumf %167, %168 : vector<8x32xf32>
    %170 = arith.truncf %169 : vector<8x32xf32> to vector<8x32xbf16>
    %c0_108 = arith.constant 0 : index
    %c0_109 = arith.constant 0 : index
    %c0_110 = arith.constant 0 : index
    %171 = vector.load %arg18[%c0_108, %c0_109, %c0_110] : memref<1x32x32xbf16, #tpu.memory_space<vmem>>, vector<1x32x32xbf16>
    %172 = vector.shape_cast %171 : vector<1x32x32xbf16> to vector<32x32xbf16>
    %cst_111 = arith.constant dense<0.000000e+00> : vector<8x32xf32>
    %173 = tpu.matmul %170, %172, %cst_111 {dimension_numbers = #tpu.dot_dimension_numbers<[1], [0], [0], [1], [0, 0, 1, 1], [], []>} : vector<8x32xbf16>, vector<32x32xbf16>, vector<8x32xf32> -> vector<8x32xf32>
    %c0_112 = arith.constant 0 : index
    %c0_113 = arith.constant 0 : index
    %c0_114 = arith.constant 0 : index
    %174 = vector.load %arg19[%c0_112, %c0_113, %c0_114] : memref<1x1x32xf32, #tpu.memory_space<vmem>>, vector<1x1x32xf32>
    %175 = vector.shape_cast %174 : vector<1x1x32xf32> to vector<1x32xf32>
    %176 = vector.broadcast %175 : vector<1x32xf32> to vector<8x32xf32>
    %177 = arith.addf %173, %176 : vector<8x32xf32>
    %178 = arith.addf %177, %159 : vector<8x32xf32>
    %179 = vector.shape_cast %178 : vector<8x32xf32> to vector<1x8x32xf32>
    %c0_115 = arith.constant 0 : index
    %c0_116 = arith.constant 0 : index
    %c0_117 = arith.constant 0 : index
    %180 = vector.load %arg26[%c0_115, %c0_116, %c0_117] : memref<1x8x32xf32, #tpu.memory_space<vmem>>, vector<1x8x32xf32>
    tpu.vector_store %arg26[%c0_115, %c0_116, %c0_117], %179 {strides = array<i32>} : memref<1x8x32xf32, #tpu.memory_space<vmem>>, vector<1x8x32xf32>,
    %c1_i32 = arith.constant 1 : i32
    %181 = arith.cmpi eq, %arg1, %c1_i32 : i32
    %182 = arith.extui %181 : i1 to i32
    %c0_i32_118 = arith.constant 0 : i32
    %183 = arith.cmpi ne, %182, %c0_i32_118 : i32
    scf.if %183 {
      %c0_119 = arith.constant 0 : index
      %c0_120 = arith.constant 0 : index
      %184 = vector.load %arg20[%c0_119, %c0_120] : memref<1x32xf32, #tpu.memory_space<vmem>>, vector<1x32xf32>
      %c0_121 = arith.constant 0 : index
      %c0_122 = arith.constant 0 : index
      %185 = vector.load %arg21[%c0_121, %c0_122] : memref<1x32xf32, #tpu.memory_space<vmem>>, vector<1x32xf32>
      %cst_123 = arith.constant dense<0.000000e+00> : vector<1x8xf32>
      %186 = vector.multi_reduction <add>, %179, %cst_123 [2] : vector<1x8x32xf32> to vector<1x8xf32>
      %187 = vector.shape_cast %186 : vector<1x8xf32> to vector<1x8x1xf32>
      %cst_124 = arith.constant 3.200000e+01 : f32
      %188 = vector.broadcast %cst_124 : f32 to vector<1x8x1xf32>
      %189 = arith.divf %187, %188 : vector<1x8x1xf32>
      %190 = vector.broadcast %189 : vector<1x8x1xf32> to vector<1x8x32xf32>
      %191 = arith.subf %179, %190 : vector<1x8x32xf32>
      %192 = arith.mulf %191, %191 : vector<1x8x32xf32>
      %cst_125 = arith.constant dense<0.000000e+00> : vector<1x8xf32>
      %193 = vector.multi_reduction <add>, %192, %cst_125 [2] : vector<1x8x32xf32> to vector<1x8xf32>
      %194 = vector.shape_cast %193 : vector<1x8xf32> to vector<1x8x1xf32>
      %cst_126 = arith.constant 3.200000e+01 : f32
      %195 = vector.broadcast %cst_126 : f32 to vector<1x8x1xf32>
      %196 = arith.divf %194, %195 : vector<1x8x1xf32>
      %197 = vector.broadcast %189 : vector<1x8x1xf32> to vector<1x8x32xf32>
      %198 = arith.subf %179, %197 : vector<1x8x32xf32>
      %cst_127 = arith.constant 9.99999993E-9 : f32
      %199 = vector.broadcast %cst_127 : f32 to vector<1x8x1xf32>
      %200 = arith.addf %196, %199 : vector<1x8x1xf32>
      %201 = math.rsqrt %200 : vector<1x8x1xf32>
      %202 = vector.broadcast %201 : vector<1x8x1xf32> to vector<1x8x32xf32>
      %203 = arith.mulf %198, %202 : vector<1x8x32xf32>
      %204 = vector.shape_cast %184 : vector<1x32xf32> to vector<1x1x32xf32>
      %205 = vector.broadcast %204 : vector<1x1x32xf32> to vector<1x8x32xf32>
      %206 = arith.mulf %203, %205 : vector<1x8x32xf32>
      %207 = vector.shape_cast %185 : vector<1x32xf32> to vector<1x1x32xf32>
      %208 = vector.broadcast %207 : vector<1x1x32xf32> to vector<1x8x32xf32>
      %209 = arith.addf %206, %208 : vector<1x8x32xf32>
      %c0_128 = arith.constant 0 : index
      %c0_129 = arith.constant 0 : index
      %c0_130 = arith.constant 0 : index
      %210 = vector.load %arg22[%c0_128, %c0_129, %c0_130] : memref<1x8x32xf32, #tpu.memory_space<vmem>>, vector<1x8x32xf32>
      %211 = arith.mulf %209, %210 : vector<1x8x32xf32>
      %cst_131 = arith.constant dense<0.000000e+00> : vector<1x8xf32>
      %212 = vector.multi_reduction <add>, %211, %cst_131 [2] : vector<1x8x32xf32> to vector<1x8xf32>
      %213 = vector.shape_cast %212 : vector<1x8xf32> to vector<1x1x8xf32>
      %c0_132 = arith.constant 0 : index
      %c0_133 = arith.constant 0 : index
      %c0_134 = arith.constant 0 : index
      %214 = vector.load %arg24[%c0_132, %c0_133, %c0_134] : memref<1x1x8xf32, #tpu.memory_space<vmem>>, vector<1x1x8xf32>
      tpu.vector_store %arg24[%c0_132, %c0_133, %c0_134], %213 {strides = array<i32>} : memref<1x1x8xf32, #tpu.memory_space<vmem>>, vector<1x1x8xf32>,
      %c0_135 = arith.constant 0 : index
      %c0_136 = arith.constant 0 : index
      %c0_137 = arith.constant 0 : index
      %215 = vector.load %arg23[%c0_135, %c0_136, %c0_137] : memref<1x8x32xf32, #tpu.memory_space<vmem>>, vector<1x8x32xf32>
      %216 = arith.mulf %209, %215 : vector<1x8x32xf32>
      %cst_138 = arith.constant dense<0.000000e+00> : vector<1x8xf32>
      %217 = vector.multi_reduction <add>, %216, %cst_138 [2] : vector<1x8x32xf32> to vector<1x8xf32>
      %218 = vector.shape_cast %217 : vector<1x8xf32> to vector<1x1x8xf32>
      %c0_139 = arith.constant 0 : index
      %c0_140 = arith.constant 0 : index
      %c0_141 = arith.constant 0 : index
      %219 = vector.load %arg25[%c0_139, %c0_140, %c0_141] : memref<1x1x8xf32, #tpu.memory_space<vmem>>, vector<1x1x8xf32>
      tpu.vector_store %arg25[%c0_139, %c0_140, %c0_141], %218 {strides = array<i32>} : memref<1x1x8xf32, #tpu.memory_space<vmem>>, vector<1x1x8xf32>,
    } else {
    }
    return
  }
  func.func @transform_0(%arg0: i32, %arg1: i32) -> (i32, i32, i32) {
    %c0_i32 = arith.constant 0 : i32
    %c0_i32_0 = arith.constant 0 : i32
    %c0_i32_1 = arith.constant 0 : i32
    return %arg0, %c0_i32, %c0_i32_0 : i32, i32, i32
  }
  func.func @transform_1(%arg0: i32, %arg1: i32) -> (i32, i32) {
    %c0_i32 = arith.constant 0 : i32
    %c0_i32_0 = arith.constant 0 : i32
    %c0_i32_1 = arith.constant 0 : i32
    return %c0_i32, %c0_i32_0 : i32, i32
  }
  func.func @transform_2(%arg0: i32, %arg1: i32) -> (i32, i32, i32) {
    %c0_i32 = arith.constant 0 : i32
    %c0_i32_0 = arith.constant 0 : i32
    %c0_i32_1 = arith.constant 0 : i32
    return %arg1, %c0_i32, %c0_i32_0 : i32, i32, i32
  }
  func.func @transform_3(%arg0: i32, %arg1: i32) -> (i32, i32, i32) {
    %c0_i32 = arith.constant 0 : i32
    %c0_i32_0 = arith.constant 0 : i32
    %c0_i32_1 = arith.constant 0 : i32
    return %arg1, %c0_i32, %c0_i32_0 : i32, i32, i32
  }
  func.func @transform_4(%arg0: i32, %arg1: i32) -> (i32, i32, i32, i32) {
    %c0_i32 = arith.constant 0 : i32
    %c0_i32_0 = arith.constant 0 : i32
    %c0_i32_1 = arith.constant 0 : i32
    %c0_i32_2 = arith.constant 0 : i32
    return %arg1, %c0_i32, %c0_i32_0, %c0_i32_1 : i32, i32, i32, i32
  }
  func.func @transform_5(%arg0: i32, %arg1: i32) -> (i32, i32, i32, i32) {
    %c0_i32 = arith.constant 0 : i32
    %c0_i32_0 = arith.constant 0 : i32
    %c0_i32_1 = arith.constant 0 : i32
    %c0_i32_2 = arith.constant 0 : i32
    return %arg1, %c0_i32, %c0_i32_0, %c0_i32_1 : i32, i32, i32, i32
  }
  func.func @transform_6(%arg0: i32, %arg1: i32) -> (i32, i32, i32, i32) {
    %c0_i32 = arith.constant 0 : i32
    %c0_i32_0 = arith.constant 0 : i32
    %c0_i32_1 = arith.constant 0 : i32
    %c0_i32_2 = arith.constant 0 : i32
    return %arg1, %c0_i32, %c0_i32_0, %c0_i32_1 : i32, i32, i32, i32
  }
  func.func @transform_7(%arg0: i32, %arg1: i32) -> (i32, i32, i32, i32) {
    %c0_i32 = arith.constant 0 : i32
    %c0_i32_0 = arith.constant 0 : i32
    %c0_i32_1 = arith.constant 0 : i32
    %c0_i32_2 = arith.constant 0 : i32
    return %arg1, %c0_i32, %c0_i32_0, %c0_i32_1 : i32, i32, i32, i32
  }
  func.func @transform_8(%arg0: i32, %arg1: i32) -> (i32, i32, i32, i32) {
    %c0_i32 = arith.constant 0 : i32
    %c0_i32_0 = arith.constant 0 : i32
    %c0_i32_1 = arith.constant 0 : i32
    %c0_i32_2 = arith.constant 0 : i32
    return %arg1, %c0_i32, %c0_i32_0, %c0_i32_1 : i32, i32, i32, i32
  }
  func.func @transform_9(%arg0: i32, %arg1: i32) -> (i32, i32, i32, i32) {
    %c0_i32 = arith.constant 0 : i32
    %c0_i32_0 = arith.constant 0 : i32
    %c0_i32_1 = arith.constant 0 : i32
    %c0_i32_2 = arith.constant 0 : i32
    return %arg1, %c0_i32, %c0_i32_0, %c0_i32_1 : i32, i32, i32, i32
  }
  func.func @transform_10(%arg0: i32, %arg1: i32) -> (i32, i32, i32, i32) {
    %c0_i32 = arith.constant 0 : i32
    %c0_i32_0 = arith.constant 0 : i32
    %c0_i32_1 = arith.constant 0 : i32
    %c0_i32_2 = arith.constant 0 : i32
    return %arg1, %c0_i32, %c0_i32_0, %c0_i32_1 : i32, i32, i32, i32
  }
  func.func @transform_11(%arg0: i32, %arg1: i32) -> (i32, i32, i32) {
    %c0_i32 = arith.constant 0 : i32
    %c0_i32_0 = arith.constant 0 : i32
    %c0_i32_1 = arith.constant 0 : i32
    return %arg1, %c0_i32, %c0_i32_0 : i32, i32, i32
  }
  func.func @transform_12(%arg0: i32, %arg1: i32) -> (i32, i32, i32) {
    %c0_i32 = arith.constant 0 : i32
    %c0_i32_0 = arith.constant 0 : i32
    %c0_i32_1 = arith.constant 0 : i32
    return %arg1, %c0_i32, %c0_i32_0 : i32, i32, i32
  }
  func.func @transform_13(%arg0: i32, %arg1: i32) -> (i32, i32, i32) {
    %c0_i32 = arith.constant 0 : i32
    %c0_i32_0 = arith.constant 0 : i32
    %c0_i32_1 = arith.constant 0 : i32
    return %arg1, %c0_i32, %c0_i32_0 : i32, i32, i32
  }
  func.func @transform_14(%arg0: i32, %arg1: i32) -> (i32, i32, i32) {
    %c0_i32 = arith.constant 0 : i32
    %c0_i32_0 = arith.constant 0 : i32
    %c0_i32_1 = arith.constant 0 : i32
    return %arg1, %c0_i32, %c0_i32_0 : i32, i32, i32
  }
  func.func @transform_15(%arg0: i32, %arg1: i32) -> (i32, i32, i32) {
    %c0_i32 = arith.constant 0 : i32
    %c0_i32_0 = arith.constant 0 : i32
    %c0_i32_1 = arith.constant 0 : i32
    return %arg1, %c0_i32, %c0_i32_0 : i32, i32, i32
  }
  func.func @transform_16(%arg0: i32, %arg1: i32) -> (i32, i32, i32) {
    %c0_i32 = arith.constant 0 : i32
    %c0_i32_0 = arith.constant 0 : i32
    %c0_i32_1 = arith.constant 0 : i32
    return %arg1, %c0_i32, %c0_i32_0 : i32, i32, i32
  }
  func.func @transform_17(%arg0: i32, %arg1: i32) -> (i32, i32, i32) {
    %c0_i32 = arith.constant 0 : i32
    %c0_i32_0 = arith.constant 0 : i32
    %c0_i32_1 = arith.constant 0 : i32
    return %arg1, %c0_i32, %c0_i32_0 : i32, i32, i32
  }
  func.func @transform_18(%arg0: i32, %arg1: i32) -> (i32, i32) {
    %c0_i32 = arith.constant 0 : i32
    %c0_i32_0 = arith.constant 0 : i32
    %c0_i32_1 = arith.constant 0 : i32
    return %c0_i32, %c0_i32_0 : i32, i32
  }
  func.func @transform_19(%arg0: i32, %arg1: i32) -> (i32, i32) {
    %c0_i32 = arith.constant 0 : i32
    %c0_i32_0 = arith.constant 0 : i32
    %c0_i32_1 = arith.constant 0 : i32
    return %c0_i32, %c0_i32_0 : i32, i32
  }
  func.func @transform_20(%arg0: i32, %arg1: i32) -> (i32, i32, i32) {
    %c0_i32 = arith.constant 0 : i32
    %c0_i32_0 = arith.constant 0 : i32
    %c0_i32_1 = arith.constant 0 : i32
    return %arg0, %c0_i32, %c0_i32_0 : i32, i32, i32
  }
  func.func @transform_21(%arg0: i32, %arg1: i32) -> (i32, i32, i32) {
    %c0_i32 = arith.constant 0 : i32
    %c0_i32_0 = arith.constant 0 : i32
    %c0_i32_1 = arith.constant 0 : i32
    return %arg0, %c0_i32, %c0_i32_0 : i32, i32, i32
  }
  func.func @transform_22(%arg0: i32, %arg1: i32) -> (i32, i32, i32) {
    %c0_i32 = arith.constant 0 : i32
    %c0_i32_0 = arith.constant 0 : i32
    %c0_i32_1 = arith.constant 0 : i32
    return %arg0, %c0_i32, %c0_i32_0 : i32, i32, i32
  }
  func.func @transform_23(%arg0: i32, %arg1: i32) -> (i32, i32, i32) {
    %c0_i32 = arith.constant 0 : i32
    %c0_i32_0 = arith.constant 0 : i32
    %c0_i32_1 = arith.constant 0 : i32
    return %arg0, %c0_i32, %c0_i32_0 : i32, i32, i32
  }
}

</mosaic_0001>

<llo_original>
// kernel: sasrec_forward.1
$region0: #{sasrec_forward.1}
  #allocation0 [shape = 'u32[]', space=smem, size = 0x4, offset = 0x4, fixed_abs, tag = 'smem constant byte address 0x4 - core index']
  #allocation1 [shape = 'u32[144,128]{1,0:T(1,128)}', space=vmem, size = 0x12000, scoped, tag = 'internal scratch']
  #allocation2 [shape = 'f32[1,8,32]{2,1,0:T(8,128)}', space=vmem, size = 0x1000, scoped, tag = 'scratch operand']
  %s0 = inlined_call_operand.vmem [shape: f32[2,8,32], index: 0, kind: input, shape index: {}]
  %s1 = inlined_call_operand.vmem [shape: f32[8,8], index: 1, kind: input, shape index: {}]
  %s2 = inlined_call_operand.vmem [shape: f32[2,1,32], index: 2, kind: input, shape index: {}]
  %s3 = inlined_call_operand.vmem [shape: f32[2,1,32], index: 3, kind: input, shape index: {}]
  %s4 = inlined_call_operand.vmem [shape: bf16[2,2,32,16], index: 4, kind: input, shape index: {}]
  %s5 = inlined_call_operand.vmem [shape: f32[2,2,1,16], index: 5, kind: input, shape index: {}]
  %s6 = inlined_call_operand.vmem [shape: bf16[2,2,32,16], index: 6, kind: input, shape index: {}]
  %s7 = inlined_call_operand.vmem [shape: f32[2,2,1,16], index: 7, kind: input, shape index: {}]
  %s8 = inlined_call_operand.vmem [shape: bf16[2,2,32,16], index: 8, kind: input, shape index: {}]
  %s9 = inlined_call_operand.vmem [shape: f32[2,2,1,16], index: 9, kind: input, shape index: {}]
  %s10 = inlined_call_operand.vmem [shape: bf16[2,2,16,32], index: 10, kind: input, shape index: {}]
  %s11 = inlined_call_operand.vmem [shape: f32[2,1,32], index: 11, kind: input, shape index: {}]
  %s12 = inlined_call_operand.vmem [shape: f32[2,1,32], index: 12, kind: input, shape index: {}]
  %s13 = inlined_call_operand.vmem [shape: f32[2,1,32], index: 13, kind: input, shape index: {}]
  %s14 = inlined_call_operand.vmem [shape: bf16[2,32,32], index: 14, kind: input, shape index: {}]
  %s15 = inlined_call_operand.vmem [shape: f32[2,1,32], index: 15, kind: input, shape index: {}]
  %s16 = inlined_call_operand.vmem [shape: bf16[2,32,32], index: 16, kind: input, shape index: {}]
  %s17 = inlined_call_operand.vmem [shape: f32[2,1,32], index: 17, kind: input, shape index: {}]
  %s18 = inlined_call_operand.vmem [shape: f32[1,32], index: 18, kind: input, shape index: {}]
  %s19 = inlined_call_operand.vmem [shape: f32[1,32], index: 19, kind: input, shape index: {}]
  %s20 = inlined_call_operand.vmem [shape: f32[2,8,32], index: 20, kind: input, shape index: {}]
  %s21 = inlined_call_operand.vmem [shape: f32[2,8,32], index: 21, kind: input, shape index: {}]
  %s22 = inlined_call_operand.hbm [shape: f32[2,1,8], index: 22, kind: output, shape index: {0}]
  %s23 = inlined_call_operand.hbm [shape: f32[2,1,8], index: 23, kind: output, shape index: {1}]
  %24 = xla_tuple %s22, %s23
  %s25 = sld [smem:[#allocation0]]
  $region137: #{sasrec_forward.1} parent=0
    _
  %s27 = ssub.s32 1, %s25
  %s28 = scalar_select 0, %s27, %s25
  $region1: #{sasrec_forward.1} parent=0
    #allocation3 [shape = 'u8[1024]{0}', space=vmem, size = 0x400, scoped, tag = 'output window, operand 0']
    #allocation4 [shape = 's32[2]{0}', space=sflag, size = 0x8, scoped, tag = 'scoped memory for sasrec_forward.1']
    #allocation5 [shape = 'u8[1024]{0}', space=vmem, size = 0x400, scoped, tag = 'output window, operand 1']
    #allocation6 [shape = 's32[2]{0}', space=sflag, size = 0x8, scoped, tag = 'scoped memory for sasrec_forward.1']
    %29 = vsyncpa [#allocation4], 0
    %s30 = scalar_lea.sflag [#allocation4], 1
    %31 = vsyncpa %s30, 0
    %32 = vsyncpa [#allocation6], 0
    %s33 = scalar_lea.sflag [#allocation6], 1
    %34 = vsyncpa %s33, 0
    loop: start=0, step=1, limit=6
    $region2: #{sasrec_forward.1} parent=1 // loop_pre_header
      _
    $region3: #{sasrec_forward.1} parent=1 // loop_header
      %s36 = sphi 0, %s40
      %p37 = scmp.ge.s32.totalorder %s36, 6
      %s43 = sphi 0, %s55
      %s44 = sphi 0, %s51
      %s45 = sphi 0, %s43
      %s46 = sphi 0, %s44
      %s47 = sphi 0, %s45
      %s48 = sphi 0, %s46
      %s58 = sphi 0, %s60
      %s61 = sphi 0, %s58
      %s62 = sphi 0, %s61
      %s78 = sphi 0, %s62
      %s82 = sphi 0, %s82
      %s84 = sphi 0, %s82
      %s85 = sphi 0, %s84
      %s99 = sphi 0, %s85
      %s105 = sphi 0, %s107
      %s108 = sphi 0, %s105
      %s109 = sphi 0, %s108
      %s125 = sphi 0, %s109
      %s131 = sphi 0, %s133
      %s134 = sphi 0, %s131
      %s135 = sphi 0, %s134
      %s151 = sphi 0, %s135
      %s157 = sphi 0, %s159
      %s160 = sphi 0, %s157
      %s161 = sphi 0, %s160
      %s177 = sphi 0, %s161
      %s183 = sphi 0, %s185
      %s186 = sphi 0, %s183
      %s187 = sphi 0, %s186
      %s203 = sphi 0, %s187
      %s209 = sphi 0, %s211
      %s212 = sphi 0, %s209
      %s213 = sphi 0, %s212
      %s229 = sphi 0, %s213
      %s235 = sphi 0, %s237
      %s238 = sphi 0, %s235
      %s239 = sphi 0, %s238
      %s255 = sphi 0, %s239
      %s261 = sphi 0, %s263
      %s264 = sphi 0, %s261
      %s265 = sphi 0, %s264
      %s281 = sphi 0, %s265
      %s287 = sphi 0, %s289
      %s290 = sphi 0, %s287
      %s291 = sphi 0, %s290
      %s307 = sphi 0, %s291
      %s313 = sphi 0, %s315
      %s316 = sphi 0, %s313
      %s317 = sphi 0, %s316
      %s333 = sphi 0, %s317
      %s339 = sphi 0, %s341
      %s342 = sphi 0, %s339
      %s343 = sphi 0, %s342
      %s359 = sphi 0, %s343
      %s365 = sphi 0, %s367
      %s368 = sphi 0, %s365
      %s369 = sphi 0, %s368
      %s385 = sphi 0, %s369
      %s391 = sphi 0, %s393
      %s394 = sphi 0, %s391
      %s395 = sphi 0, %s394
      %s411 = sphi 0, %s395
      %s417 = sphi 0, %s419
      %s420 = sphi 0, %s417
      %s421 = sphi 0, %s420
      %s437 = sphi 0, %s421
      %s443 = sphi 0, %s445
      %s446 = sphi 0, %s443
      %s447 = sphi 0, %s446
      %s463 = sphi 0, %s447
      %s469 = sphi 0, %s471
      %s472 = sphi 0, %s469
      %s473 = sphi 0, %s472
      %s489 = sphi 0, %s473
      %s495 = sphi 0, %s497
      %s498 = sphi 0, %s495
      %s499 = sphi 0, %s498
      %s515 = sphi 0, %s499
      %s519 = sphi 0, %s519
      %s521 = sphi 0, %s519
      %s522 = sphi 0, %s521
      %s536 = sphi 0, %s522
      %s540 = sphi 0, %s540
      %s542 = sphi 0, %s540
      %s543 = sphi 0, %s542
      %s557 = sphi 0, %s543
      %s563 = sphi 0, %s565
      %s566 = sphi 0, %s563
      %s567 = sphi 0, %s566
      %s583 = sphi 0, %s567
      %s589 = sphi 0, %s591
      %s592 = sphi 0, %s589
      %s593 = sphi 0, %s592
      %s609 = sphi 0, %s593
      %s615 = sphi 0, %s617
      %s618 = sphi 0, %s615
      %s619 = sphi 0, %s618
      %s635 = sphi 0, %s619
      %s641 = sphi 0, %s643
      %s644 = sphi 0, %s641
      %s645 = sphi 0, %s644
      %s661 = sphi 0, %s645
    $region4: #{sasrec_forward.1} parent=1 // loop_header_branch
      %39 = sbr.rel (%p37) target = $region8
    $region5: #{sasrec_forward.1} parent=1 // loop_body
      %s41 = ssub.s32 %s36, 1
      %s42 = ssub.s32 %s36, 2
      %s49 = sadd.s32 1, %s44
      %p50 = scmp.ge.s32.totalorder %s49, 2
      %s51 = scalar_select %p50, 0, %s49
      %s52 = sadd.s32 1, %s43
      %s53 = scalar_select %p50, %s52, %s43
      %p54 = scmp.ge.s32.totalorder %s53, 2
      %s55 = scalar_select %p54, 0, %s53
      %s56 = ssub.s32 %s43, %s55
      %p57 = scmp.eq.s32.totalorder %s56, 0
      %s59 = sadd.s32 %s58, 1
      %s60 = scalar_select %p57, %s58, %s59
      %p63 = pneg %p57
      %p64 = scmp.eq.s32.totalorder %s36, 3
      %p65 = por %p63, %p64
      %p66 = scmp.ne.s32.totalorder %s58, %s61
      %p67 = scmp.eq.s32.totalorder %s36, 0
      %p68 = por %p66, %p67
      %p69 = scmp.ne.s32.totalorder %s58, %s61
      %p70 = scmp.eq.s32.totalorder %s41, 3
      %p71 = por %p69, %p70
      %p72 = scmp.ne.s32.totalorder %s61, %s62
      %p73 = scmp.eq.s32.totalorder %s41, 0
      %p74 = por %p72, %p73
      %p75 = scmp.ne.s32.totalorder %s61, %s62
      %p76 = scmp.eq.s32.totalorder %s42, 3
      %p77 = por %p75, %p76
      %p79 = scmp.ne.s32.totalorder %s62, %s78
      %p80 = scmp.eq.s32.totalorder %s42, 0
      %p81 = por %p79, %p80
      %s83 = sadd.s32 %s82, 1
      %p86 = scmp.eq.s32.totalorder %s36, 3
      %p87 = scmp.ne.s32.totalorder %s82, %s84
      %p88 = scmp.eq.s32.totalorder %s36, 0
      %p89 = por %p87, %p88
      %p90 = scmp.ne.s32.totalorder %s82, %s84
      %p91 = scmp.eq.s32.totalorder %s41, 3
      %p92 = por %p90, %p91
      %p93 = scmp.ne.s32.totalorder %s84, %s85
      %p94 = scmp.eq.s32.totalorder %s41, 0
      %p95 = por %p93, %p94
      %p96 = scmp.ne.s32.totalorder %s84, %s85
      %p97 = scmp.eq.s32.totalorder %s42, 3
      %p98 = por %p96, %p97
      %p100 = scmp.ne.s32.totalorder %s85, %s99
      %p101 = scmp.eq.s32.totalorder %s42, 0
      %p102 = por %p100, %p101
      %s103 = ssub.s32 %s44, %s51
      %p104 = scmp.eq.s32.totalorder %s103, 0
      %s106 = sadd.s32 %s105, 1
      %s107 = scalar_select %p104, %s105, %s106
      %p110 = pneg %p104
      %p111 = scmp.eq.s32.totalorder %s36, 3
      %p112 = por %p110, %p111
      %p113 = scmp.ne.s32.totalorder %s105, %s108
      %p114 = scmp.eq.s32.totalorder %s36, 0
      %p115 = por %p113, %p114
      %p116 = scmp.ne.s32.totalorder %s105, %s108
      %p117 = scmp.eq.s32.totalorder %s41, 3
      %p118 = por %p116, %p117
      %p119 = scmp.ne.s32.totalorder %s108, %s109
      %p120 = scmp.eq.s32.totalorder %s41, 0
      %p121 = por %p119, %p120
      %p122 = scmp.ne.s32.totalorder %s108, %s109
      %p123 = scmp.eq.s32.totalorder %s42, 3
      %p124 = por %p122, %p123
      %p126 = scmp.ne.s32.totalorder %s109, %s125
      %p127 = scmp.eq.s32.totalorder %s42, 0
      %p128 = por %p126, %p127
      %s129 = ssub.s32 %s44, %s51
      %p130 = scmp.eq.s32.totalorder %s129, 0
      %s132 = sadd.s32 %s131, 1
      %s133 = scalar_select %p130, %s131, %s132
      %p136 = pneg %p130
      %p137 = scmp.eq.s32.totalorder %s36, 3
      %p138 = por %p136, %p137
      %p139 = scmp.ne.s32.totalorder %s131, %s134
      %p140 = scmp.eq.s32.totalorder %s36, 0
      %p141 = por %p139, %p140
      %p142 = scmp.ne.s32.totalorder %s131, %s134
      %p143 = scmp.eq.s32.totalorder %s41, 3
      %p144 = por %p142, %p143
      %p145 = scmp.ne.s32.totalorder %s134, %s135
      %p146 = scmp.eq.s32.totalorder %s41, 0
      %p147 = por %p145, %p146
      %p148 = scmp.ne.s32.totalorder %s134, %s135
      %p149 = scmp.eq.s32.totalorder %s42, 3
      %p150 = por %p148, %p149
      %p152 = scmp.ne.s32.totalorder %s135, %s151
      %p153 = scmp.eq.s32.totalorder %s42, 0
      %p154 = por %p152, %p153
      %s155 = ssub.s32 %s44, %s51
      %p156 = scmp.eq.s32.totalorder %s155, 0
      %s158 = sadd.s32 %s157, 1
      %s159 = scalar_select %p156, %s157, %s158
      %p162 = pneg %p156
      %p163 = scmp.eq.s32.totalorder %s36, 3
      %p164 = por %p162, %p163
      %p165 = scmp.ne.s32.totalorder %s157, %s160
      %p166 = scmp.eq.s32.totalorder %s36, 0
      %p167 = por %p165, %p166
      %p168 = scmp.ne.s32.totalorder %s157, %s160
      %p169 = scmp.eq.s32.totalorder %s41, 3
      %p170 = por %p168, %p169
      %p171 = scmp.ne.s32.totalorder %s160, %s161
      %p172 = scmp.eq.s32.totalorder %s41, 0
      %p173 = por %p171, %p172
      %p174 = scmp.ne.s32.totalorder %s160, %s161
      %p175 = scmp.eq.s32.totalorder %s42, 3
      %p176 = por %p174, %p175
      %p178 = scmp.ne.s32.totalorder %s161, %s177
      %p179 = scmp.eq.s32.totalorder %s42, 0
      %p180 = por %p178, %p179
      %s181 = ssub.s32 %s44, %s51
      %p182 = scmp.eq.s32.totalorder %s181, 0
      %s184 = sadd.s32 %s183, 1
      %s185 = scalar_select %p182, %s183, %s184
      %p188 = pneg %p182
      %p189 = scmp.eq.s32.totalorder %s36, 3
      %p190 = por %p188, %p189
      %p191 = scmp.ne.s32.totalorder %s183, %s186
      %p192 = scmp.eq.s32.totalorder %s36, 0
      %p193 = por %p191, %p192
      %p194 = scmp.ne.s32.totalorder %s183, %s186
      %p195 = scmp.eq.s32.totalorder %s41, 3
      %p196 = por %p194, %p195
      %p197 = scmp.ne.s32.totalorder %s186, %s187
      %p198 = scmp.eq.s32.totalorder %s41, 0
      %p199 = por %p197, %p198
      %p200 = scmp.ne.s32.totalorder %s186, %s187
      %p201 = scmp.eq.s32.totalorder %s42, 3
      %p202 = por %p200, %p201
      %p204 = scmp.ne.s32.totalorder %s187, %s203
      %p205 = scmp.eq.s32.totalorder %s42, 0
      %p206 = por %p204, %p205
      %s207 = ssub.s32 %s44, %s51
      %p208 = scmp.eq.s32.totalorder %s207, 0
      %s210 = sadd.s32 %s209, 1
      %s211 = scalar_select %p208, %s209, %s210
      %p214 = pneg %p208
      %p215 = scmp.eq.s32.totalorder %s36, 3
      %p216 = por %p214, %p215
      %p217 = scmp.ne.s32.totalorder %s209, %s212
      %p218 = scmp.eq.s32.totalorder %s36, 0
      %p219 = por %p217, %p218
      %p220 = scmp.ne.s32.totalorder %s209, %s212
      %p221 = scmp.eq.s32.totalorder %s41, 3
      %p222 = por %p220, %p221
      %p223 = scmp.ne.s32.totalorder %s212, %s213
      %p224 = scmp.eq.s32.totalorder %s41, 0
      %p225 = por %p223, %p224
      %p226 = scmp.ne.s32.totalorder %s212, %s213
      %p227 = scmp.eq.s32.totalorder %s42, 3
      %p228 = por %p226, %p227
      %p230 = scmp.ne.s32.totalorder %s213, %s229
      %p231 = scmp.eq.s32.totalorder %s42, 0
      %p232 = por %p230, %p231
      %s233 = ssub.s32 %s44, %s51
      %p234 = scmp.eq.s32.totalorder %s233, 0
      %s236 = sadd.s32 %s235, 1
      %s237 = scalar_select %p234, %s235, %s236
      %p240 = pneg %p234
      %p241 = scmp.eq.s32.totalorder %s36, 3
      %p242 = por %p240, %p241
      %p243 = scmp.ne.s32.totalorder %s235, %s238
      %p244 = scmp.eq.s32.totalorder %s36, 0
      %p245 = por %p243, %p244
      %p246 = scmp.ne.s32.totalorder %s235, %s238
      %p247 = scmp.eq.s32.totalorder %s41, 3
      %p248 = por %p246, %p247
      %p249 = scmp.ne.s32.totalorder %s238, %s239
      %p250 = scmp.eq.s32.totalorder %s41, 0
      %p251 = por %p249, %p250
      %p252 = scmp.ne.s32.totalorder %s238, %s239
      %p253 = scmp.eq.s32.totalorder %s42, 3
      %p254 = por %p252, %p253
      %p256 = scmp.ne.s32.totalorder %s239, %s255
      %p257 = scmp.eq.s32.totalorder %s42, 0
      %p258 = por %p256, %p257
      %s259 = ssub.s32 %s44, %s51
      %p260 = scmp.eq.s32.totalorder %s259, 0
      %s262 = sadd.s32 %s261, 1
      %s263 = scalar_select %p260, %s261, %s262
      %p266 = pneg %p260
      %p267 = scmp.eq.s32.totalorder %s36, 3
      %p268 = por %p266, %p267
      %p269 = scmp.ne.s32.totalorder %s261, %s264
      %p270 = scmp.eq.s32.totalorder %s36, 0
      %p271 = por %p269, %p270
      %p272 = scmp.ne.s32.totalorder %s261, %s264
      %p273 = scmp.eq.s32.totalorder %s41, 3
      %p274 = por %p272, %p273
      %p275 = scmp.ne.s32.totalorder %s264, %s265
      %p276 = scmp.eq.s32.totalorder %s41, 0
      %p277 = por %p275, %p276
      %p278 = scmp.ne.s32.totalorder %s264, %s265
      %p279 = scmp.eq.s32.totalorder %s42, 3
      %p280 = por %p278, %p279
      %p282 = scmp.ne.s32.totalorder %s265, %s281
      %p283 = scmp.eq.s32.totalorder %s42, 0
      %p284 = por %p282, %p283
      %s285 = ssub.s32 %s44, %s51
      %p286 = scmp.eq.s32.totalorder %s285, 0
      %s288 = sadd.s32 %s287, 1
      %s289 = scalar_select %p286, %s287, %s288
      %p292 = pneg %p286
      %p293 = scmp.eq.s32.totalorder %s36, 3
      %p294 = por %p292, %p293
      %p295 = scmp.ne.s32.totalorder %s287, %s290
      %p296 = scmp.eq.s32.totalorder %s36, 0
      %p297 = por %p295, %p296
      %p298 = scmp.ne.s32.totalorder %s287, %s290
      %p299 = scmp.eq.s32.totalorder %s41, 3
      %p300 = por %p298, %p299
      %p301 = scmp.ne.s32.totalorder %s290, %s291
      %p302 = scmp.eq.s32.totalorder %s41, 0
      %p303 = por %p301, %p302
      %p304 = scmp.ne.s32.totalorder %s290, %s291
      %p305 = scmp.eq.s32.totalorder %s42, 3
      %p306 = por %p304, %p305
      %p308 = scmp.ne.s32.totalorder %s291, %s307
      %p309 = scmp.eq.s32.totalorder %s42, 0
      %p310 = por %p308, %p309
      %s311 = ssub.s32 %s44, %s51
      %p312 = scmp.eq.s32.totalorder %s311, 0
      %s314 = sadd.s32 %s313, 1
      %s315 = scalar_select %p312, %s313, %s314
      %p318 = pneg %p312
      %p319 = scmp.eq.s32.totalorder %s36, 3
      %p320 = por %p318, %p319
      %p321 = scmp.ne.s32.totalorder %s313, %s316
      %p322 = scmp.eq.s32.totalorder %s36, 0
      %p323 = por %p321, %p322
      %p324 = scmp.ne.s32.totalorder %s313, %s316
      %p325 = scmp.eq.s32.totalorder %s41, 3
      %p326 = por %p324, %p325
      %p327 = scmp.ne.s32.totalorder %s316, %s317
      %p328 = scmp.eq.s32.totalorder %s41, 0
      %p329 = por %p327, %p328
      %p330 = scmp.ne.s32.totalorder %s316, %s317
      %p331 = scmp.eq.s32.totalorder %s42, 3
      %p332 = por %p330, %p331
      %p334 = scmp.ne.s32.totalorder %s317, %s333
      %p335 = scmp.eq.s32.totalorder %s42, 0
      %p336 = por %p334, %p335
      %s337 = ssub.s32 %s44, %s51
      %p338 = scmp.eq.s32.totalorder %s337, 0
      %s340 = sadd.s32 %s339, 1
      %s341 = scalar_select %p338, %s339, %s340
      %p344 = pneg %p338
      %p345 = scmp.eq.s32.totalorder %s36, 3
      %p346 = por %p344, %p345
      %p347 = scmp.ne.s32.totalorder %s339, %s342
      %p348 = scmp.eq.s32.totalorder %s36, 0
      %p349 = por %p347, %p348
      %p350 = scmp.ne.s32.totalorder %s339, %s342
      %p351 = scmp.eq.s32.totalorder %s41, 3
      %p352 = por %p350, %p351
      %p353 = scmp.ne.s32.totalorder %s342, %s343
      %p354 = scmp.eq.s32.totalorder %s41, 0
      %p355 = por %p353, %p354
      %p356 = scmp.ne.s32.totalorder %s342, %s343
      %p357 = scmp.eq.s32.totalorder %s42, 3
      %p358 = por %p356, %p357
      %p360 = scmp.ne.s32.totalorder %s343, %s359
      %p361 = scmp.eq.s32.totalorder %s42, 0
      %p362 = por %p360, %p361
      %s363 = ssub.s32 %s44, %s51
      %p364 = scmp.eq.s32.totalorder %s363, 0
      %s366 = sadd.s32 %s365, 1
      %s367 = scalar_select %p364, %s365, %s366
      %p370 = pneg %p364
      %p371 = scmp.eq.s32.totalorder %s36, 3
      %p372 = por %p370, %p371
      %p373 = scmp.ne.s32.totalorder %s365, %s368
      %p374 = scmp.eq.s32.totalorder %s36, 0
      %p375 = por %p373, %p374
      %p376 = scmp.ne.s32.totalorder %s365, %s368
      %p377 = scmp.eq.s32.totalorder %s41, 3
      %p378 = por %p376, %p377
      %p379 = scmp.ne.s32.totalorder %s368, %s369
      %p380 = scmp.eq.s32.totalorder %s41, 0
      %p381 = por %p379, %p380
      %p382 = scmp.ne.s32.totalorder %s368, %s369
      %p383 = scmp.eq.s32.totalorder %s42, 3
      %p384 = por %p382, %p383
      %p386 = scmp.ne.s32.totalorder %s369, %s385
      %p387 = scmp.eq.s32.totalorder %s42, 0
      %p388 = por %p386, %p387
      %s389 = ssub.s32 %s44, %s51
      %p390 = scmp.eq.s32.totalorder %s389, 0
      %s392 = sadd.s32 %s391, 1
      %s393 = scalar_select %p390, %s391, %s392
      %p396 = pneg %p390
      %p397 = scmp.eq.s32.totalorder %s36, 3
      %p398 = por %p396, %p397
      %p399 = scmp.ne.s32.totalorder %s391, %s394
      %p400 = scmp.eq.s32.totalorder %s36, 0
      %p401 = por %p399, %p400
      %p402 = scmp.ne.s32.totalorder %s391, %s394
      %p403 = scmp.eq.s32.totalorder %s41, 3
      %p404 = por %p402, %p403
      %p405 = scmp.ne.s32.totalorder %s394, %s395
      %p406 = scmp.eq.s32.totalorder %s41, 0
      %p407 = por %p405, %p406
      %p408 = scmp.ne.s32.totalorder %s394, %s395
      %p409 = scmp.eq.s32.totalorder %s42, 3
      %p410 = por %p408, %p409
      %p412 = scmp.ne.s32.totalorder %s395, %s411
      %p413 = scmp.eq.s32.totalorder %s42, 0
      %p414 = por %p412, %p413
      %s415 = ssub.s32 %s44, %s51
      %p416 = scmp.eq.s32.totalorder %s415, 0
      %s418 = sadd.s32 %s417, 1
      %s419 = scalar_select %p416, %s417, %s418
      %p422 = pneg %p416
      %p423 = scmp.eq.s32.totalorder %s36, 3
      %p424 = por %p422, %p423
      %p425 = scmp.ne.s32.totalorder %s417, %s420
      %p426 = scmp.eq.s32.totalorder %s36, 0
      %p427 = por %p425, %p426
      %p428 = scmp.ne.s32.totalorder %s417, %s420
      %p429 = scmp.eq.s32.totalorder %s41, 3
      %p430 = por %p428, %p429
      %p431 = scmp.ne.s32.totalorder %s420, %s421
      %p432 = scmp.eq.s32.totalorder %s41, 0
      %p433 = por %p431, %p432
      %p434 = scmp.ne.s32.totalorder %s420, %s421
      %p435 = scmp.eq.s32.totalorder %s42, 3
      %p436 = por %p434, %p435
      %p438 = scmp.ne.s32.totalorder %s421, %s437
      %p439 = scmp.eq.s32.totalorder %s42, 0
      %p440 = por %p438, %p439
      %s441 = ssub.s32 %s44, %s51
      %p442 = scmp.eq.s32.totalorder %s441, 0
      %s444 = sadd.s32 %s443, 1
      %s445 = scalar_select %p442, %s443, %s444
      %p448 = pneg %p442
      %p449 = scmp.eq.s32.totalorder %s36, 3
      %p450 = por %p448, %p449
      %p451 = scmp.ne.s32.totalorder %s443, %s446
      %p452 = scmp.eq.s32.totalorder %s36, 0
      %p453 = por %p451, %p452
      %p454 = scmp.ne.s32.totalorder %s443, %s446
      %p455 = scmp.eq.s32.totalorder %s41, 3
      %p456 = por %p454, %p455
      %p457 = scmp.ne.s32.totalorder %s446, %s447
      %p458 = scmp.eq.s32.totalorder %s41, 0
      %p459 = por %p457, %p458
      %p460 = scmp.ne.s32.totalorder %s446, %s447
      %p461 = scmp.eq.s32.totalorder %s42, 3
      %p462 = por %p460, %p461
      %p464 = scmp.ne.s32.totalorder %s447, %s463
      %p465 = scmp.eq.s32.totalorder %s42, 0
      %p466 = por %p464, %p465
      %s467 = ssub.s32 %s44, %s51
      %p468 = scmp.eq.s32.totalorder %s467, 0
      %s470 = sadd.s32 %s469, 1
      %s471 = scalar_select %p468, %s469, %s470
      %p474 = pneg %p468
      %p475 = scmp.eq.s32.totalorder %s36, 3
      %p476 = por %p474, %p475
      %p477 = scmp.ne.s32.totalorder %s469, %s472
      %p478 = scmp.eq.s32.totalorder %s36, 0
      %p479 = por %p477, %p478
      %p480 = scmp.ne.s32.totalorder %s469, %s472
      %p481 = scmp.eq.s32.totalorder %s41, 3
      %p482 = por %p480, %p481
      %p483 = scmp.ne.s32.totalorder %s472, %s473
      %p484 = scmp.eq.s32.totalorder %s41, 0
      %p485 = por %p483, %p484
      %p486 = scmp.ne.s32.totalorder %s472, %s473
      %p487 = scmp.eq.s32.totalorder %s42, 3
      %p488 = por %p486, %p487
      %p490 = scmp.ne.s32.totalorder %s473, %s489
      %p491 = scmp.eq.s32.totalorder %s42, 0
      %p492 = por %p490, %p491
      %s493 = ssub.s32 %s44, %s51
      %p494 = scmp.eq.s32.totalorder %s493, 0
      %s496 = sadd.s32 %s495, 1
      %s497 = scalar_select %p494, %s495, %s496
      %p500 = pneg %p494
      %p501 = scmp.eq.s32.totalorder %s36, 3
      %p502 = por %p500, %p501
      %p503 = scmp.ne.s32.totalorder %s495, %s498
      %p504 = scmp.eq.s32.totalorder %s36, 0
      %p505 = por %p503, %p504
      %p506 = scmp.ne.s32.totalorder %s495, %s498
      %p507 = scmp.eq.s32.totalorder %s41, 3
      %p508 = por %p506, %p507
      %p509 = scmp.ne.s32.totalorder %s498, %s499
      %p510 = scmp.eq.s32.totalorder %s41, 0
      %p511 = por %p509, %p510
      %p512 = scmp.ne.s32.totalorder %s498, %s499
      %p513 = scmp.eq.s32.totalorder %s42, 3
      %p514 = por %p512, %p513
      %p516 = scmp.ne.s32.totalorder %s499, %s515
      %p517 = scmp.eq.s32.totalorder %s42, 0
      %p518 = por %p516, %p517
      %s520 = sadd.s32 %s519, 1
      %p523 = scmp.eq.s32.totalorder %s36, 3
      %p524 = scmp.ne.s32.totalorder %s519, %s521
      %p525 = scmp.eq.s32.totalorder %s36, 0
      %p526 = por %p524, %p525
      %p527 = scmp.ne.s32.totalorder %s519, %s521
      %p528 = scmp.eq.s32.totalorder %s41, 3
      %p529 = por %p527, %p528
      %p530 = scmp.ne.s32.totalorder %s521, %s522
      %p531 = scmp.eq.s32.totalorder %s41, 0
      %p532 = por %p530, %p531
      %p533 = scmp.ne.s32.totalorder %s521, %s522
      %p534 = scmp.eq.s32.totalorder %s42, 3
      %p535 = por %p533, %p534
      %p537 = scmp.ne.s32.totalorder %s522, %s536
      %p538 = scmp.eq.s32.totalorder %s42, 0
      %p539 = por %p537, %p538
      %s541 = sadd.s32 %s540, 1
      %p544 = scmp.eq.s32.totalorder %s36, 3
      %p545 = scmp.ne.s32.totalorder %s540, %s542
      %p546 = scmp.eq.s32.totalorder %s36, 0
      %p547 = por %p545, %p546
      %p548 = scmp.ne.s32.totalorder %s540, %s542
      %p549 = scmp.eq.s32.totalorder %s41, 3
      %p550 = por %p548, %p549
      %p551 = scmp.ne.s32.totalorder %s542, %s543
      %p552 = scmp.eq.s32.totalorder %s41, 0
      %p553 = por %p551, %p552
      %p554 = scmp.ne.s32.totalorder %s542, %s543
      %p555 = scmp.eq.s32.totalorder %s42, 3
      %p556 = por %p554, %p555
      %p558 = scmp.ne.s32.totalorder %s543, %s557
      %p559 = scmp.eq.s32.totalorder %s42, 0
      %p560 = por %p558, %p559
      %s561 = ssub.s32 %s43, %s55
      %p562 = scmp.eq.s32.totalorder %s561, 0
      %s564 = sadd.s32 %s563, 1
      %s565 = scalar_select %p562, %s563, %s564
      %p568 = pneg %p562
      %p569 = scmp.eq.s32.totalorder %s36, 3
      %p570 = por %p568, %p569
      %p571 = scmp.ne.s32.totalorder %s563, %s566
      %p572 = scmp.eq.s32.totalorder %s36, 0
      %p573 = por %p571, %p572
      %p574 = scmp.ne.s32.totalorder %s563, %s566
      %p575 = scmp.eq.s32.totalorder %s41, 3
      %p576 = por %p574, %p575
      %p577 = scmp.ne.s32.totalorder %s566, %s567
      %p578 = scmp.eq.s32.totalorder %s41, 0
      %p579 = por %p577, %p578
      %p580 = scmp.ne.s32.totalorder %s566, %s567
      %p581 = scmp.eq.s32.totalorder %s42, 3
      %p582 = por %p580, %p581
      %p584 = scmp.ne.s32.totalorder %s567, %s583
      %p585 = scmp.eq.s32.totalorder %s42, 0
      %p586 = por %p584, %p585
      %s587 = ssub.s32 %s43, %s55
      %p588 = scmp.eq.s32.totalorder %s587, 0
      %s590 = sadd.s32 %s589, 1
      %s591 = scalar_select %p588, %s589, %s590
      %p594 = pneg %p588
      %p595 = scmp.eq.s32.totalorder %s36, 3
      %p596 = por %p594, %p595
      %p597 = scmp.ne.s32.totalorder %s589, %s592
      %p598 = scmp.eq.s32.totalorder %s36, 0
      %p599 = por %p597, %p598
      %p600 = scmp.ne.s32.totalorder %s589, %s592
      %p601 = scmp.eq.s32.totalorder %s41, 3
      %p602 = por %p600, %p601
      %p603 = scmp.ne.s32.totalorder %s592, %s593
      %p604 = scmp.eq.s32.totalorder %s41, 0
      %p605 = por %p603, %p604
      %p606 = scmp.ne.s32.totalorder %s592, %s593
      %p607 = scmp.eq.s32.totalorder %s42, 3
      %p608 = por %p606, %p607
      %p610 = scmp.ne.s32.totalorder %s593, %s609
      %p611 = scmp.eq.s32.totalorder %s42, 0
      %p612 = por %p610, %p611
      %s613 = ssub.s32 %s43, %s55
      %p614 = scmp.eq.s32.totalorder %s613, 0
      %s616 = sadd.s32 %s615, 1
      %s617 = scalar_select %p614, %s615, %s616
      %p620 = pneg %p614
      %p621 = scmp.eq.s32.totalorder %s36, 3
      %p622 = por %p620, %p621
      %p623 = scmp.ne.s32.totalorder %s615, %s618
      %p624 = scmp.eq.s32.totalorder %s36, 0
      %p625 = por %p623, %p624
      %p626 = scmp.ne.s32.totalorder %s615, %s618
      %p627 = scmp.eq.s32.totalorder %s41, 3
      %p628 = por %p626, %p627
      %p629 = scmp.ne.s32.totalorder %s618, %s619
      %p630 = scmp.eq.s32.totalorder %s41, 0
      %p631 = por %p629, %p630
      %p632 = scmp.ne.s32.totalorder %s618, %s619
      %p633 = scmp.eq.s32.totalorder %s42, 3
      %p634 = por %p632, %p633
      %p636 = scmp.ne.s32.totalorder %s619, %s635
      %p637 = scmp.eq.s32.totalorder %s42, 0
      %p638 = por %p636, %p637
      %s639 = ssub.s32 %s43, %s55
      %p640 = scmp.eq.s32.totalorder %s639, 0
      %s642 = sadd.s32 %s641, 1
      %s643 = scalar_select %p640, %s641, %s642
      %p646 = pneg %p640
      %p647 = scmp.eq.s32.totalorder %s36, 3
      %p648 = por %p646, %p647
      %p649 = scmp.ne.s32.totalorder %s641, %s644
      %p650 = scmp.eq.s32.totalorder %s36, 0
      %p651 = por %p649, %p650
      %p652 = scmp.ne.s32.totalorder %s641, %s644
      %p653 = scmp.eq.s32.totalorder %s41, 3
      %p654 = por %p652, %p653
      %p655 = scmp.ne.s32.totalorder %s644, %s645
      %p656 = scmp.eq.s32.totalorder %s41, 0
      %p657 = por %p655, %p656
      %p658 = scmp.ne.s32.totalorder %s644, %s645
      %p659 = scmp.eq.s32.totalorder %s42, 3
      %p660 = por %p658, %p659
      %p662 = scmp.ne.s32.totalorder %s645, %s661
      %p663 = scmp.eq.s32.totalorder %s42, 0
      %p664 = por %p662, %p663
      %p665 = scmp.le.s32.totalorder 1, %s36
      %p666 = scmp.lt.s32.totalorder %s36, 5
      %p667 = pnand %p665, %p666
      %p668 = pneg %p667
      // Predicated region
      $region9: #{sasrec_forward.1} parent=5 // pred_check
        _
      $region10: #{sasrec_forward.1} parent=5 // pred_check_branch
        %670 = sbr.rel (%p667) target = $region12
      $region11: #{sasrec_forward.1} parent=5 // pred_region
        %s671 = ssub.s32 %s36, 1
        // Predicated region
        $region13: #{sasrec_forward.1} parent=11 // pred_check
          %p672 = pneg %p95
        $region14: #{sasrec_forward.1} parent=11 // pred_check_branch
          %674 = sbr.rel (%p672) target = $region16
        $region15: #{sasrec_forward.1} parent=11 // pred_region
          _
        $region16: #{sasrec_forward.1} parent=11 // pred_fallthru
          _
        // Predicated region
        $region17: #{sasrec_forward.1} parent=11 // pred_check
          %p675 = pneg %p532
        $region18: #{sasrec_forward.1} parent=11 // pred_check_branch
          %677 = sbr.rel (%p675) target = $region20
        $region19: #{sasrec_forward.1} parent=11 // pred_region
          _
        $region20: #{sasrec_forward.1} parent=11 // pred_fallthru
          _
        // Predicated region
        $region21: #{sasrec_forward.1} parent=11 // pred_check
          %p678 = pneg %p553
        $region22: #{sasrec_forward.1} parent=11 // pred_check_branch
          %680 = sbr.rel (%p678) target = $region24
        $region23: #{sasrec_forward.1} parent=11 // pred_region
          _
        $region24: #{sasrec_forward.1} parent=11 // pred_fallthru
          _
      $region12: #{sasrec_forward.1} parent=5 // pred_fallthru
        _
      %p681 = scmp.lt.s32.totalorder %s36, 4
      // Predicated region
      $region25: #{sasrec_forward.1} parent=5 // pred_check
        %p682 = pneg %p681
      $region26: #{sasrec_forward.1} parent=5 // pred_check_branch
        %684 = sbr.rel (%p682) target = $region28
      $region27: #{sasrec_forward.1} parent=5 // pred_region
        // Predicated region
        $region29: #{sasrec_forward.1} parent=27 // pred_check
          %p685 = pneg %p68
        $region30: #{sasrec_forward.1} parent=27 // pred_check_branch
          %687 = sbr.rel (%p685) target = $region32
        $region31: #{sasrec_forward.1} parent=27 // pred_region
          %p688 = scmp.lt.s32.totalorder %s43, 1
          %s689 = scalar_select %p688, %s43, 1
          %s690 = smul.addr %s689, 8
          %s691 = scalar_lea.vmem %s0, %s690
        $region32: #{sasrec_forward.1} parent=27 // pred_fallthru
          _
        // Predicated region
        $region33: #{sasrec_forward.1} parent=27 // pred_check
          %p692 = pneg %p115
        $region34: #{sasrec_forward.1} parent=27 // pred_check_branch
          %694 = sbr.rel (%p692) target = $region36
        $region35: #{sasrec_forward.1} parent=27 // pred_region
          %p695 = scmp.lt.s32.totalorder %s44, 1
          %s696 = scalar_select %p695, %s44, 1
          %s697 = scalar_lea.vmem %s2, %s696
        $region36: #{sasrec_forward.1} parent=27 // pred_fallthru
          _
        // Predicated region
        $region37: #{sasrec_forward.1} parent=27 // pred_check
          %p698 = pneg %p141
        $region38: #{sasrec_forward.1} parent=27 // pred_check_branch
          %700 = sbr.rel (%p698) target = $region40
        $region39: #{sasrec_forward.1} parent=27 // pred_region
          %p701 = scmp.lt.s32.totalorder %s44, 1
          %s702 = scalar_select %p701, %s44, 1
          %s703 = scalar_lea.vmem %s3, %s702
        $region40: #{sasrec_forward.1} parent=27 // pred_fallthru
          _
        // Predicated region
        $region41: #{sasrec_forward.1} parent=27 // pred_check
          %p704 = pneg %p167
        $region42: #{sasrec_forward.1} parent=27 // pred_check_branch
          %706 = sbr.rel (%p704) target = $region44
        $region43: #{sasrec_forward.1} parent=27 // pred_region
          %p707 = scmp.lt.s32.totalorder %s44, 1
          %s708 = scalar_select %p707, %s44, 1
          %s709 = smul.addr %s708, 8
          %s710 = smul.addr %s709, 4
          %s711 = scalar_lea.vmem %s4, %s710
        $region44: #{sasrec_forward.1} parent=27 // pred_fallthru
          _
        // Predicated region
        $region45: #{sasrec_forward.1} parent=27 // pred_check
          %p712 = pneg %p193
        $region46: #{sasrec_forward.1} parent=27 // pred_check_branch
          %714 = sbr.rel (%p712) target = $region48
        $region47: #{sasrec_forward.1} parent=27 // pred_region
          %p715 = scmp.lt.s32.totalorder %s44, 1
          %s716 = scalar_select %p715, %s44, 1
          %s717 = smul.addr %s716, 2
          %s718 = scalar_lea.vmem %s5, %s717
        $region48: #{sasrec_forward.1} parent=27 // pred_fallthru
          _
        // Predicated region
        $region49: #{sasrec_forward.1} parent=27 // pred_check
          %p719 = pneg %p219
        $region50: #{sasrec_forward.1} parent=27 // pred_check_branch
          %721 = sbr.rel (%p719) target = $region52
        $region51: #{sasrec_forward.1} parent=27 // pred_region
          %p722 = scmp.lt.s32.totalorder %s44, 1
          %s723 = scalar_select %p722, %s44, 1
          %s724 = smul.addr %s723, 8
          %s725 = smul.addr %s724, 4
          %s726 = scalar_lea.vmem %s6, %s725
        $region52: #{sasrec_forward.1} parent=27 // pred_fallthru
          _
        // Predicated region
        $region53: #{sasrec_forward.1} parent=27 // pred_check
          %p727 = pneg %p245
        $region54: #{sasrec_forward.1} parent=27 // pred_check_branch
          %729 = sbr.rel (%p727) target = $region56
        $region55: #{sasrec_forward.1} parent=27 // pred_region
          %p730 = scmp.lt.s32.totalorder %s44, 1
          %s731 = scalar_select %p730, %s44, 1
          %s732 = smul.addr %s731, 2
          %s733 = scalar_lea.vmem %s7, %s732
        $region56: #{sasrec_forward.1} parent=27 // pred_fallthru
          _
        // Predicated region
        $region57: #{sasrec_forward.1} parent=27 // pred_check
          %p734 = pneg %p271
        $region58: #{sasrec_forward.1} parent=27 // pred_check_branch
          %736 = sbr.rel (%p734) target = $region60
        $region59: #{sasrec_forward.1} parent=27 // pred_region
          %p737 = scmp.lt.s32.totalorder %s44, 1
          %s738 = scalar_select %p737, %s44, 1
          %s739 = smul.addr %s738, 8
          %s740 = smul.addr %s739, 4
          %s741 = scalar_lea.vmem %s8, %s740
        $region60: #{sasrec_forward.1} parent=27 // pred_fallthru
          _
        // Predicated region
        $region61: #{sasrec_forward.1} parent=27 // pred_check
          %p742 = pneg %p297
        $region62: #{sasrec_forward.1} parent=27 // pred_check_branch
          %744 = sbr.rel (%p742) target = $region64
        $region63: #{sasrec_forward.1} parent=27 // pred_region
          %p745 = scmp.lt.s32.totalorder %s44, 1
          %s746 = scalar_select %p745, %s44, 1
          %s747 = smul.addr %s746, 2
          %s748 = scalar_lea.vmem %s9, %s747
        $region64: #{sasrec_forward.1} parent=27 // pred_fallthru
          _
        // Predicated region
        $region65: #{sasrec_forward.1} parent=27 // pred_check
          %p749 = pneg %p323
        $region66: #{sasrec_forward.1} parent=27 // pred_check_branch
          %751 = sbr.rel (%p749) target = $region68
        $region67: #{sasrec_forward.1} parent=27 // pred_region
          %p752 = scmp.lt.s32.totalorder %s44, 1
          %s753 = scalar_select %p752, %s44, 1
          %s754 = smul.addr %s753, 4
          %s755 = smul.addr %s754, 4
          %s756 = scalar_lea.vmem %s10, %s755
        $region68: #{sasrec_forward.1} parent=27 // pred_fallthru
          _
        // Predicated region
        $region69: #{sasrec_forward.1} parent=27 // pred_check
          %p757 = pneg %p349
        $region70: #{sasrec_forward.1} parent=27 // pred_check_branch
          %759 = sbr.rel (%p757) target = $region72
        $region71: #{sasrec_forward.1} parent=27 // pred_region
          %p760 = scmp.lt.s32.totalorder %s44, 1
          %s761 = scalar_select %p760, %s44, 1
          %s762 = scalar_lea.vmem %s11, %s761
        $region72: #{sasrec_forward.1} parent=27 // pred_fallthru
          _
        // Predicated region
        $region73: #{sasrec_forward.1} parent=27 // pred_check
          %p763 = pneg %p375
        $region74: #{sasrec_forward.1} parent=27 // pred_check_branch
          %765 = sbr.rel (%p763) target = $region76
        $region75: #{sasrec_forward.1} parent=27 // pred_region
          %p766 = scmp.lt.s32.totalorder %s44, 1
          %s767 = scalar_select %p766, %s44, 1
          %s768 = scalar_lea.vmem %s12, %s767
        $region76: #{sasrec_forward.1} parent=27 // pred_fallthru
          _
        // Predicated region
        $region77: #{sasrec_forward.1} parent=27 // pred_check
          %p769 = pneg %p401
        $region78: #{sasrec_forward.1} parent=27 // pred_check_branch
          %771 = sbr.rel (%p769) target = $region80
        $region79: #{sasrec_forward.1} parent=27 // pred_region
          %p772 = scmp.lt.s32.totalorder %s44, 1
          %s773 = scalar_select %p772, %s44, 1
          %s774 = scalar_lea.vmem %s13, %s773
        $region80: #{sasrec_forward.1} parent=27 // pred_fallthru
          _
        // Predicated region
        $region81: #{sasrec_forward.1} parent=27 // pred_check
          %p775 = pneg %p427
        $region82: #{sasrec_forward.1} parent=27 // pred_check_branch
          %777 = sbr.rel (%p775) target = $region84
        $region83: #{sasrec_forward.1} parent=27 // pred_region
          %p778 = scmp.lt.s32.totalorder %s44, 1
          %s779 = scalar_select %p778, %s44, 1
          %s780 = smul.addr %s779, 4
          %s781 = smul.addr %s780, 4
          %s782 = scalar_lea.vmem %s14, %s781
        $region84: #{sasrec_forward.1} parent=27 // pred_fallthru
          _
        // Predicated region
        $region85: #{sasrec_forward.1} parent=27 // pred_check
          %p783 = pneg %p453
        $region86: #{sasrec_forward.1} parent=27 // pred_check_branch
          %785 = sbr.rel (%p783) target = $region88
        $region87: #{sasrec_forward.1} parent=27 // pred_region
          %p786 = scmp.lt.s32.totalorder %s44, 1
          %s787 = scalar_select %p786, %s44, 1
          %s788 = scalar_lea.vmem %s15, %s787
        $region88: #{sasrec_forward.1} parent=27 // pred_fallthru
          _
        // Predicated region
        $region89: #{sasrec_forward.1} parent=27 // pred_check
          %p789 = pneg %p479
        $region90: #{sasrec_forward.1} parent=27 // pred_check_branch
          %791 = sbr.rel (%p789) target = $region92
        $region91: #{sasrec_forward.1} parent=27 // pred_region
          %p792 = scmp.lt.s32.totalorder %s44, 1
          %s793 = scalar_select %p792, %s44, 1
          %s794 = smul.addr %s793, 4
          %s795 = smul.addr %s794, 4
          %s796 = scalar_lea.vmem %s16, %s795
        $region92: #{sasrec_forward.1} parent=27 // pred_fallthru
          _
        // Predicated region
        $region93: #{sasrec_forward.1} parent=27 // pred_check
          %p797 = pneg %p505
        $region94: #{sasrec_forward.1} parent=27 // pred_check_branch
          %799 = sbr.rel (%p797) target = $region96
        $region95: #{sasrec_forward.1} parent=27 // pred_region
          %p800 = scmp.lt.s32.totalorder %s44, 1
          %s801 = scalar_select %p800, %s44, 1
          %s802 = scalar_lea.vmem %s17, %s801
        $region96: #{sasrec_forward.1} parent=27 // pred_fallthru
          _
        // Predicated region
        $region97: #{sasrec_forward.1} parent=27 // pred_check
          %p803 = pneg %p573
        $region98: #{sasrec_forward.1} parent=27 // pred_check_branch
          %805 = sbr.rel (%p803) target = $region100
        $region99: #{sasrec_forward.1} parent=27 // pred_region
          %p806 = scmp.lt.s32.totalorder %s43, 1
          %s807 = scalar_select %p806, %s43, 1
          %s808 = smul.addr %s807, 8
          %s809 = scalar_lea.vmem %s20, %s808
        $region100: #{sasrec_forward.1} parent=27 // pred_fallthru
          _
        // Predicated region
        $region101: #{sasrec_forward.1} parent=27 // pred_check
          %p810 = pneg %p599
        $region102: #{sasrec_forward.1} parent=27 // pred_check_branch
          %812 = sbr.rel (%p810) target = $region104
        $region103: #{sasrec_forward.1} parent=27 // pred_region
          %p813 = scmp.lt.s32.totalorder %s43, 1
          %s814 = scalar_select %p813, %s43, 1
          %s815 = smul.addr %s814, 8
          %s816 = scalar_lea.vmem %s21, %s815
        $region104: #{sasrec_forward.1} parent=27 // pred_fallthru
          _
      $region28: #{sasrec_forward.1} parent=5 // pred_fallthru
        _
      %p817 = scmp.le.s32.totalorder 1, %s36
      %p818 = scmp.lt.s32.totalorder %s36, 5
      %p819 = pnand %p817, %p818
      %p820 = pneg %p819
      // Predicated region
      $region105: #{sasrec_forward.1} parent=5 // pred_check
        _
      $region106: #{sasrec_forward.1} parent=5 // pred_check_branch
        %822 = sbr.rel (%p819) target = $region108
      $region107: #{sasrec_forward.1} parent=5 // pred_region
        %s823 = ssub.s32 %s36, 1
        %p824 = scmp.lt.s32.totalorder %s45, 1
        %s825 = scalar_select %p824, %s45, 1
        %s826 = smul.addr %s825, 8
        %s827 = scalar_lea.vmem %s0, %s826
        %p828 = pneg %p74
        %p829 = pneg %p71
        %p830 = pneg %p95
        %p831 = pneg %p92
        %p832 = scmp.lt.s32.totalorder %s46, 1
        %s833 = scalar_select %p832, %s46, 1
        %s834 = scalar_lea.vmem %s2, %s833
        %p835 = pneg %p121
        %p836 = pneg %p118
        %p837 = scmp.lt.s32.totalorder %s46, 1
        %s838 = scalar_select %p837, %s46, 1
        %s839 = scalar_lea.vmem %s3, %s838
        %p840 = pneg %p147
        %p841 = pneg %p144
        %p842 = scmp.lt.s32.totalorder %s46, 1
        %s843 = scalar_select %p842, %s46, 1
        %s844 = smul.addr %s843, 8
        %s845 = smul.addr %s844, 4
        %s846 = scalar_lea.vmem %s4, %s845
        %p847 = pneg %p173
        %p848 = pneg %p170
        %p849 = scmp.lt.s32.totalorder %s46, 1
        %s850 = scalar_select %p849, %s46, 1
        %s851 = smul.addr %s850, 2
        %s852 = scalar_lea.vmem %s5, %s851
        %p853 = pneg %p199
        %p854 = pneg %p196
        %p855 = scmp.lt.s32.totalorder %s46, 1
        %s856 = scalar_select %p855, %s46, 1
        %s857 = smul.addr %s856, 8
        %s858 = smul.addr %s857, 4
        %s859 = scalar_lea.vmem %s6, %s858
        %p860 = pneg %p225
        %p861 = pneg %p222
        %p862 = scmp.lt.s32.totalorder %s46, 1
        %s863 = scalar_select %p862, %s46, 1
        %s864 = smul.addr %s863, 2
        %s865 = scalar_lea.vmem %s7, %s864
        %p866 = pneg %p251
        %p867 = pneg %p248
        %p868 = scmp.lt.s32.totalorder %s46, 1
        %s869 = scalar_select %p868, %s46, 1
        %s870 = smul.addr %s869, 8
        %s871 = smul.addr %s870, 4
        %s872 = scalar_lea.vmem %s8, %s871
        %p873 = pneg %p277
        %p874 = pneg %p274
        %p875 = scmp.lt.s32.totalorder %s46, 1
        %s876 = scalar_select %p875, %s46, 1
        %s877 = smul.addr %s876, 2
        %s878 = scalar_lea.vmem %s9, %s877
        %p879 = pneg %p303
        %p880 = pneg %p300
        %p881 = scmp.lt.s32.totalorder %s46, 1
        %s882 = scalar_select %p881, %s46, 1
        %s883 = smul.addr %s882, 4
        %s884 = smul.addr %s883, 4
        %s885 = scalar_lea.vmem %s10, %s884
        %p886 = pneg %p329
        %p887 = pneg %p326
        %p888 = scmp.lt.s32.totalorder %s46, 1
        %s889 = scalar_select %p888, %s46, 1
        %s890 = scalar_lea.vmem %s11, %s889
        %p891 = pneg %p355
        %p892 = pneg %p352
        %p893 = scmp.lt.s32.totalorder %s46, 1
        %s894 = scalar_select %p893, %s46, 1
        %s895 = scalar_lea.vmem %s12, %s894
        %p896 = pneg %p381
        %p897 = pneg %p378
        %p898 = scmp.lt.s32.totalorder %s46, 1
        %s899 = scalar_select %p898, %s46, 1
        %s900 = scalar_lea.vmem %s13, %s899
        %p901 = pneg %p407
        %p902 = pneg %p404
        %p903 = scmp.lt.s32.totalorder %s46, 1
        %s904 = scalar_select %p903, %s46, 1
        %s905 = smul.addr %s904, 4
        %s906 = smul.addr %s905, 4
        %s907 = scalar_lea.vmem %s14, %s906
        %p908 = pneg %p433
        %p909 = pneg %p430
        %p910 = scmp.lt.s32.totalorder %s46, 1
        %s911 = scalar_select %p910, %s46, 1
        %s912 = scalar_lea.vmem %s15, %s911
        %p913 = pneg %p459
        %p914 = pneg %p456
        %p915 = scmp.lt.s32.totalorder %s46, 1
        %s916 = scalar_select %p915, %s46, 1
        %s917 = smul.addr %s916, 4
        %s918 = smul.addr %s917, 4
        %s919 = scalar_lea.vmem %s16, %s918
        %p920 = pneg %p485
        %p921 = pneg %p482
        %p922 = scmp.lt.s32.totalorder %s46, 1
        %s923 = scalar_select %p922, %s46, 1
        %s924 = scalar_lea.vmem %s17, %s923
        %p925 = pneg %p511
        %p926 = pneg %p508
        %p927 = pneg %p532
        %p928 = pneg %p529
        %p929 = pneg %p553
        %p930 = pneg %p550
        %p931 = scmp.lt.s32.totalorder %s45, 1
        %s932 = scalar_select %p931, %s45, 1
        %s933 = smul.addr %s932, 8
        %s934 = scalar_lea.vmem %s20, %s933
        %p935 = pneg %p579
        %p936 = pneg %p576
        %p937 = scmp.lt.s32.totalorder %s45, 1
        %s938 = scalar_select %p937, %s45, 1
        %s939 = smul.addr %s938, 8
        %s940 = scalar_lea.vmem %s21, %s939
        %p941 = pneg %p605
        %p942 = pneg %p602
        %p943 = pneg %p631
        %p944 = pneg %p628
        %s945 = sand.u32 %s618, 1
        %s946 = scalar_lea.sflag [#allocation4], %s945
        %s947 = sand.u32 %s618, 1
        %s948 = scalar_lea.vmem [#allocation3], %s947
        %p949 = pneg %p657
        %p950 = pneg %p654
        %s951 = sand.u32 %s644, 1
        %s952 = scalar_lea.sflag [#allocation6], %s951
        %s953 = sand.u32 %s644, 1
        %s954 = scalar_lea.vmem [#allocation5], %s953
        %p955 = scmp.lt.s32.totalorder %s45, 1
        %s956 = scalar_select %p955, %s45, 1
        %s957 = smul.addr %s956, 8
        %s958 = scalar_lea.vmem %s0, %s957
        %p959 = scmp.lt.s32.totalorder %s46, 1
        %s960 = scalar_select %p959, %s46, 1
        %s961 = scalar_lea.vmem %s2, %s960
        %p962 = scmp.lt.s32.totalorder %s46, 1
        %s963 = scalar_select %p962, %s46, 1
        %s964 = scalar_lea.vmem %s3, %s963
        %p965 = scmp.lt.s32.totalorder %s46, 1
        %s966 = scalar_select %p965, %s46, 1
        %s967 = smul.addr %s966, 8
        %s968 = smul.addr %s967, 4
        %s969 = scalar_lea.vmem %s4, %s968
        %p970 = scmp.lt.s32.totalorder %s46, 1
        %s971 = scalar_select %p970, %s46, 1
        %s972 = smul.addr %s971, 2
        %s973 = scalar_lea.vmem %s5, %s972
        %p974 = scmp.lt.s32.totalorder %s46, 1
        %s975 = scalar_select %p974, %s46, 1
        %s976 = smul.addr %s975, 8
        %s977 = smul.addr %s976, 4
        %s978 = scalar_lea.vmem %s6, %s977
        %p979 = scmp.lt.s32.totalorder %s46, 1
        %s980 = scalar_select %p979, %s46, 1
        %s981 = smul.addr %s980, 2
        %s982 = scalar_lea.vmem %s7, %s981
        %p983 = scmp.lt.s32.totalorder %s46, 1
        %s984 = scalar_select %p983, %s46, 1
        %s985 = smul.addr %s984, 8
        %s986 = smul.addr %s985, 4
        %s987 = scalar_lea.vmem %s8, %s986
        %p988 = scmp.lt.s32.totalorder %s46, 1
        %s989 = scalar_select %p988, %s46, 1
        %s990 = smul.addr %s989, 2
        %s991 = scalar_lea.vmem %s9, %s990
        %p992 = scmp.lt.s32.totalorder %s46, 1
        %s993 = scalar_select %p992, %s46, 1
        %s994 = smul.addr %s993, 4
        %s995 = smul.addr %s994, 4
        %s996 = scalar_lea.vmem %s10, %s995
        %p997 = scmp.lt.s32.totalorder %s46, 1
        %s998 = scalar_select %p997, %s46, 1
        %s999 = scalar_lea.vmem %s11, %s998
        %p1000 = scmp.lt.s32.totalorder %s46, 1
        %s1001 = scalar_select %p1000, %s46, 1
        %s1002 = scalar_lea.vmem %s12, %s1001
        %p1003 = scmp.lt.s32.totalorder %s46, 1
        %s1004 = scalar_select %p1003, %s46, 1
        %s1005 = scalar_lea.vmem %s13, %s1004
        %p1006 = scmp.lt.s32.totalorder %s46, 1
        %s1007 = scalar_select %p1006, %s46, 1
        %s1008 = smul.addr %s1007, 4
        %s1009 = smul.addr %s1008, 4
        %s1010 = scalar_lea.vmem %s14, %s1009
        %p1011 = scmp.lt.s32.totalorder %s46, 1
        %s1012 = scalar_select %p1011, %s46, 1
        %s1013 = scalar_lea.vmem %s15, %s1012
        %p1014 = scmp.lt.s32.totalorder %s46, 1
        %s1015 = scalar_select %p1014, %s46, 1
        %s1016 = smul.addr %s1015, 4
        %s1017 = smul.addr %s1016, 4
        %s1018 = scalar_lea.vmem %s16, %s1017
        %p1019 = scmp.lt.s32.totalorder %s46, 1
        %s1020 = scalar_select %p1019, %s46, 1
        %s1021 = scalar_lea.vmem %s17, %s1020
        %p1022 = scmp.lt.s32.totalorder %s45, 1
        %s1023 = scalar_select %p1022, %s45, 1
        %s1024 = smul.addr %s1023, 8
        %s1025 = scalar_lea.vmem %s20, %s1024
        %p1026 = scmp.lt.s32.totalorder %s45, 1
        %s1027 = scalar_select %p1026, %s45, 1
        %s1028 = smul.addr %s1027, 8
        %s1029 = scalar_lea.vmem %s21, %s1028
        %p1031 = scmp.eq.s32.totalorder %s46, 0
        // Predicated region
        $region109: #{sasrec_forward.1} parent=107 // pred_check
          %p1032 = pneg %p1031
        $region110: #{sasrec_forward.1} parent=107 // pred_check_branch
          %1034 = sbr.rel (%p1032) target = $region112
        $region111: #{sasrec_forward.1} parent=107 // pred_region
          %v1035 = vld [vmem:[%s958] sm:$0xff]
          %vm1036 = vcmask 261120
          %1037 = vst.msk [vmem:[#allocation2] sm:$0xff] %vm1036, %v1035
        $region112: #{sasrec_forward.1} parent=107 // pred_fallthru
          _
        %v1038 = vld [vmem:[#allocation2] sm:$0xff]
        %v1039 = vld [vmem:[%s961] sm:$0x1]
        %v1040 = vld [vmem:[%s964] sm:$0x1]
        %vm1041 = vcmask 261120
        %v1042 = vsel %vm1041, %v1038, 0.0
        %1043 = vadd.xlane.f32.xlu0 %v1042
        %v1044 = vpop.xlane.xlu0 %1043
        %v1045 = vrcp.pop 32.0
        %v1046 = vmul.f32 %v1044, %v1045
        %v1047 = vsub.f32 %v1038, %v1046
        %v1048 = vmul.f32 %v1047, %v1047
        %v1049 = vsel %vm1041, %v1048, 0.0
        %1050 = vadd.xlane.f32.xlu0 %v1049
        %v1051 = vpop.xlane.xlu0 %1050
        %v1052 = vmul.f32 %v1051, %v1045
        %v1053 = vadd.f32 %v1052, 1e-08
        %v1054 = vrsqrt.pop %v1053
        %v1055 = vmul.f32 %v1047, %v1054
        %v1057 = vlaneseq
        %v1058 = vshrl.u32 %v1057, 7
        %v1059 = vsub.s32 0, %v1058
        %v1060 = vrot.slane %v1039, %v1059
        %v1062 = vmul.f32 %v1055, %v1060
        %v1064 = vlaneseq
        %v1065 = vshrl.u32 %v1064, 7
        %v1066 = vsub.s32 0, %v1065
        %v1067 = vrot.slane %v1040, %v1066
        %v1069 = vadd.f32 %v1062, %v1067
        %v1070 = vpack.c.bf16 %v1038, %v1038
        %v1071 = vpack.c.bf16 %v1069, %v1069
        %v1072 = vld [vmem:[%s1] sm:$0xff]
        %v1073 = vld [vmem:[%s969] sm:$0xf]
        %v1074 = vld [vmem:[%s969 + $0x4] sm:$0xf]
        %v1075 = vld [vmem:[%s969 + $0x8] sm:$0xf]
        %v1076 = vld [vmem:[%s969 + $0xc] sm:$0xf]
        %v1077 = vld [vmem:[%s973] sm:$0x1]
        %v1079 = vlaneseq
        %v1080 = vshrl.u32 %v1079, 7
        %v1081 = vsub.s32 0, %v1080
        %v1082 = vrot.slane %v1077, %v1081
        %v1088 = vunpack.c.l.b16 %v1073
        %v1089 = vunpack.c.l.b16 %v1074
        %v1090 = vunpack.c.l.b16 %v1075
        %v1091 = vunpack.c.l.b16 %v1076
        %v1092 = vpack.c.b16 %v1089, %v1088
        %v1093 = vpack.c.b16 %v1091, %v1090
        %v1097 = vsel %vm1041, %v1071, 0
        %1099 = vmatprep.subr.bf16.mxu0 0
        %1100 = vmatpush1.bf16.msra.mxu0 %v1092
        %1101 = vmatprep.subr.bf16.mxu0 0
        %1102 = vmatpush1.bf16.msra.mxu0 %v1093
        %1103 = vmatprep.subr.bf16.mxu0 0
        %1104 = vmatpush1.bf16.msra.mxu0 0
        %1105 = vmatprep.subr.bf16.mxu0 0
        %1106 = vmatpush1.bf16.msra.mxu0 0
        %1107 = vmatprep.subr.bf16.mxu0 0
        %1108 = vmatpush1.bf16.msra.mxu0 0
        %1109 = vmatprep.subr.bf16.mxu0 0
        %1110 = vmatpush1.bf16.msra.mxu0 0
        %1111 = vmatprep.subr.bf16.mxu0 0
        %1112 = vmatpush1.bf16.msra.mxu0 0
        %1113 = vmatprep.subr.bf16.mxu0 0
        %1114 = vmatpush1.bf16.msra.mxu0 0
        %1115 = vmatprep.subr.bf16.mxu0 0
        %1116 = vmatpush1.bf16.msra.mxu0 0
        %1117 = vmatprep.subr.bf16.mxu0 0
        %1118 = vmatpush1.bf16.msra.mxu0 0
        %1119 = vmatprep.subr.bf16.mxu0 0
        %1120 = vmatpush1.bf16.msra.mxu0 0
        %1121 = vmatprep.subr.bf16.mxu0 0
        %1122 = vmatpush1.bf16.msra.mxu0 0
        %1123 = vmatprep.subr.bf16.mxu0 0
        %1124 = vmatpush1.bf16.msra.mxu0 0
        %1125 = vmatprep.subr.bf16.mxu0 0
        %1126 = vmatpush1.bf16.msra.mxu0 0
        %1127 = vmatprep.subr.bf16.mxu0 0
        %1128 = vmatpush1.bf16.msra.mxu0 0
        %1129 = vmatprep.subr.bf16.mxu0 0
        %1130 = vmatpush1.bf16.msra.mxu0 0
        %1131 = vmatprep.mubr.bf16.mxu0 0
        %1132 = vmatmul.mubr.bf16.gmra.mrb[0].mxu0 %v1097
        %v1133 = vpop.f32.mrb[0].mxu0
        %v1134 = vadd.f32 %v1082, %v1133
        %v1135 = vpop.f32.mrb[0].mxu0
        %v1136 = vpop.f32.mrb[0].mxu0
        %v1137 = vpop.f32.mrb[0].mxu0
        %1138 = vdwg.mxu0
        %v1139 = vld [vmem:[%s978] sm:$0xf]
        %v1140 = vld [vmem:[%s978 + $0x4] sm:$0xf]
        %v1141 = vld [vmem:[%s978 + $0x8] sm:$0xf]
        %v1142 = vld [vmem:[%s978 + $0xc] sm:$0xf]
        %v1143 = vld [vmem:[%s982] sm:$0x1]
        %v1145 = vlaneseq
        %v1146 = vshrl.u32 %v1145, 7
        %v1147 = vsub.s32 0, %v1146
        %v1148 = vrot.slane %v1143, %v1147
        %v1154 = vunpack.c.l.b16 %v1139
        %v1155 = vunpack.c.l.b16 %v1140
        %v1156 = vunpack.c.l.b16 %v1141
        %v1157 = vunpack.c.l.b16 %v1142
        %v1158 = vpack.c.b16 %v1155, %v1154
        %v1159 = vpack.c.b16 %v1157, %v1156
        %v1163 = vsel %vm1041, %v1070, 0
        %1165 = vmatprep.subr.bf16.mxu0 0
        %1166 = vmatpush1.bf16.msra.mxu0 %v1158
        %1167 = vmatprep.subr.bf16.mxu0 0
        %1168 = vmatpush1.bf16.msra.mxu0 %v1159
        %1169 = vmatprep.subr.bf16.mxu0 0
        %1170 = vmatpush1.bf16.msra.mxu0 0
        %1171 = vmatprep.subr.bf16.mxu0 0
        %1172 = vmatpush1.bf16.msra.mxu0 0
        %1173 = vmatprep.subr.bf16.mxu0 0
        %1174 = vmatpush1.bf16.msra.mxu0 0
        %1175 = vmatprep.subr.bf16.mxu0 0
        %1176 = vmatpush1.bf16.msra.mxu0 0
        %1177 = vmatprep.subr.bf16.mxu0 0
        %1178 = vmatpush1.bf16.msra.mxu0 0
        %1179 = vmatprep.subr.bf16.mxu0 0
        %1180 = vmatpush1.bf16.msra.mxu0 0
        %1181 = vmatprep.subr.bf16.mxu0 0
        %1182 = vmatpush1.bf16.msra.mxu0 0
        %1183 = vmatprep.subr.bf16.mxu0 0
        %1184 = vmatpush1.bf16.msra.mxu0 0
        %1185 = vmatprep.subr.bf16.mxu0 0
        %1186 = vmatpush1.bf16.msra.mxu0 0
        %1187 = vmatprep.subr.bf16.mxu0 0
        %1188 = vmatpush1.bf16.msra.mxu0 0
        %1189 = vmatprep.subr.bf16.mxu0 0
        %1190 = vmatpush1.bf16.msra.mxu0 0
        %1191 = vmatprep.subr.bf16.mxu0 0
        %1192 = vmatpush1.bf16.msra.mxu0 0
        %1193 = vmatprep.subr.bf16.mxu0 0
        %1194 = vmatpush1.bf16.msra.mxu0 0
        %1195 = vmatprep.subr.bf16.mxu0 0
        %1196 = vmatpush1.bf16.msra.mxu0 0
        %1197 = vmatprep.mubr.bf16.mxu0 0
        %1198 = vmatmul.mubr.bf16.gmra.mrb[0].mxu0 %v1163
        %v1199 = vpop.f32.mrb[0].mxu0
        %v1200 = vadd.f32 %v1148, %v1199
        %v1201 = vpop.f32.mrb[0].mxu0
        %v1202 = vpop.f32.mrb[0].mxu0
        %v1203 = vpop.f32.mrb[0].mxu0
        %1204 = vdwg.mxu0
        %v1205 = vld [vmem:[%s987] sm:$0xf]
        %v1206 = vld [vmem:[%s987 + $0x4] sm:$0xf]
        %v1207 = vld [vmem:[%s987 + $0x8] sm:$0xf]
        %v1208 = vld [vmem:[%s987 + $0xc] sm:$0xf]
        %v1209 = vld [vmem:[%s991] sm:$0x1]
        %v1211 = vlaneseq
        %v1212 = vshrl.u32 %v1211, 7
        %v1213 = vsub.s32 0, %v1212
        %v1214 = vrot.slane %v1209, %v1213
        %v1220 = vunpack.c.l.b16 %v1205
        %v1221 = vunpack.c.l.b16 %v1206
        %v1222 = vunpack.c.l.b16 %v1207
        %v1223 = vunpack.c.l.b16 %v1208
        %v1224 = vpack.c.b16 %v1221, %v1220
        %v1225 = vpack.c.b16 %v1223, %v1222
        %1228 = vmatprep.subr.bf16.mxu0 0
        %1229 = vmatpush1.bf16.msra.mxu0 %v1224
        %1230 = vmatprep.subr.bf16.mxu0 0
        %1231 = vmatpush1.bf16.msra.mxu0 %v1225
        %1232 = vmatprep.subr.bf16.mxu0 0
        %1233 = vmatpush1.bf16.msra.mxu0 0
        %1234 = vmatprep.subr.bf16.mxu0 0
        %1235 = vmatpush1.bf16.msra.mxu0 0
        %1236 = vmatprep.subr.bf16.mxu0 0
        %1237 = vmatpush1.bf16.msra.mxu0 0
        %1238 = vmatprep.subr.bf16.mxu0 0
        %1239 = vmatpush1.bf16.msra.mxu0 0
        %1240 = vmatprep.subr.bf16.mxu0 0
        %1241 = vmatpush1.bf16.msra.mxu0 0
        %1242 = vmatprep.subr.bf16.mxu0 0
        %1243 = vmatpush1.bf16.msra.mxu0 0
        %1244 = vmatprep.subr.bf16.mxu0 0
        %1245 = vmatpush1.bf16.msra.mxu0 0
        %1246 = vmatprep.subr.bf16.mxu0 0
        %1247 = vmatpush1.bf16.msra.mxu0 0
        %1248 = vmatprep.subr.bf16.mxu0 0
        %1249 = vmatpush1.bf16.msra.mxu0 0
        %1250 = vmatprep.subr.bf16.mxu0 0
        %1251 = vmatpush1.bf16.msra.mxu0 0
        %1252 = vmatprep.subr.bf16.mxu0 0
        %1253 = vmatpush1.bf16.msra.mxu0 0
        %1254 = vmatprep.subr.bf16.mxu0 0
        %1255 = vmatpush1.bf16.msra.mxu0 0
        %1256 = vmatprep.subr.bf16.mxu0 0
        %1257 = vmatpush1.bf16.msra.mxu0 0
        %1258 = vmatprep.subr.bf16.mxu0 0
        %1259 = vmatpush1.bf16.msra.mxu0 0
        %1260 = vmatprep.mubr.bf16.mxu0 0
        %1261 = vmatmul.mubr.bf16.gmra.mrb[0].mxu0 %v1163
        %v1262 = vpop.f32.mrb[0].mxu0
        %v1263 = vadd.f32 %v1214, %v1262
        %v1264 = vpop.f32.mrb[0].mxu0
        %v1265 = vpop.f32.mrb[0].mxu0
        %v1266 = vpop.f32.mrb[0].mxu0
        %1267 = vdwg.mxu0
        %v1268 = vpack.c.bf16 %v1134, %v1134
        %v1269 = vpack.c.bf16 %v1200, %v1200
        %v1270 = vpack.c.bf16 %v1263, %v1263
        %vm1271 = vcmask 130048
        %v1273 = vsel %vm1271, %v1268, 0
        %v1276 = vsel %vm1271, %v1269, 0
        %1278 = vmatprep.subr.bf16.mxu0 0
        %1279 = vmatpush1.bf16.xpose.msra.mxu0 %v1276
        %1280 = vmatprep.subr.bf16.mxu0 0
        %1281 = vmatpush1.bf16.xpose.msra.mxu0 0
        %1282 = vmatprep.subr.bf16.mxu0 0
        %1283 = vmatpush1.bf16.xpose.msra.mxu0 0
        %1284 = vmatprep.subr.bf16.mxu0 0
        %1285 = vmatpush1.bf16.xpose.msra.mxu0 0
        %1286 = vmatprep.subr.bf16.mxu0 0
        %1287 = vmatpush1.bf16.xpose.msra.mxu0 0
        %1288 = vmatprep.subr.bf16.mxu0 0
        %1289 = vmatpush1.bf16.xpose.msra.mxu0 0
        %1290 = vmatprep.subr.bf16.mxu0 0
        %1291 = vmatpush1.bf16.xpose.msra.mxu0 0
        %1292 = vmatprep.subr.bf16.mxu0 0
        %1293 = vmatpush1.bf16.xpose.msra.mxu0 0
        %1294 = vmatprep.subr.bf16.mxu0 0
        %1295 = vmatpush1.bf16.xpose.msra.mxu0 0
        %1296 = vmatprep.subr.bf16.mxu0 0
        %1297 = vmatpush1.bf16.xpose.msra.mxu0 0
        %1298 = vmatprep.subr.bf16.mxu0 0
        %1299 = vmatpush1.bf16.xpose.msra.mxu0 0
        %1300 = vmatprep.subr.bf16.mxu0 0
        %1301 = vmatpush1.bf16.xpose.msra.mxu0 0
        %1302 = vmatprep.subr.bf16.mxu0 0
        %1303 = vmatpush1.bf16.xpose.msra.mxu0 0
        %1304 = vmatprep.subr.bf16.mxu0 0
        %1305 = vmatpush1.bf16.xpose.msra.mxu0 0
        %1306 = vmatprep.subr.bf16.mxu0 0
        %1307 = vmatpush1.bf16.xpose.msra.mxu0 0
        %1308 = vmatprep.subr.bf16.mxu0 0
        %1309 = vmatpush1.bf16.xpose.msra.mxu0 0
        %1310 = vmatprep.mubr.bf16.mxu0 0
        %1311 = vmatmul.mubr.bf16.gmra.mrb[0].mxu0 %v1273
        %v1312 = vpop.f32.mrb[0].mxu0
        %v1313 = vadd.f32 %v1072, %v1312
        %v1314 = vpop.f32.mrb[0].mxu0
        %v1315 = vpop.f32.mrb[0].mxu0
        %v1316 = vpop.f32.mrb[0].mxu0
        %1317 = vdwg.mxu0
        %vm1318 = vcmask 64512
        %v1319 = vsel %vm1318, %v1313, -inf
        %1320 = vmax.xlane.f32.xlu0 %v1319
        %v1321 = vpop.xlane.xlu0 %1320
        %v1322 = vsub.f32 %v1313, %v1321
        %v1323 = vmul.f32 %v1322, 1.442695
        %v1324 = vpow.pop %v1323
        %v1325 = vsel %vm1318, %v1324, 0.0
        %1326 = vadd.xlane.f32.xlu0 %v1325
        %v1327 = vpop.xlane.xlu0 %1326
        %v1328 = vrcp.pop %v1327
        %v1329 = vmul.f32 %v1324, %v1328
        %v1330 = vpack.c.bf16 %v1329, %v1329
        %v1332 = vsel %vm1318, %v1330, 0
        %vm1334 = vcmask 1043456
        %v1336 = vsel %vm1334, %v1270, 0
        %1338 = vmatprep.subr.bf16.mxu0 0
        %1339 = vmatpush1.bf16.msra.mxu0 %v1336
        %1340 = vmatprep.subr.bf16.mxu0 0
        %1341 = vmatpush1.bf16.msra.mxu0 0
        %1342 = vmatprep.subr.bf16.mxu0 0
        %1343 = vmatpush1.bf16.msra.mxu0 0
        %1344 = vmatprep.subr.bf16.mxu0 0
        %1345 = vmatpush1.bf16.msra.mxu0 0
        %1346 = vmatprep.subr.bf16.mxu0 0
        %1347 = vmatpush1.bf16.msra.mxu0 0
        %1348 = vmatprep.subr.bf16.mxu0 0
        %1349 = vmatpush1.bf16.msra.mxu0 0
        %1350 = vmatprep.subr.bf16.mxu0 0
        %1351 = vmatpush1.bf16.msra.mxu0 0
        %1352 = vmatprep.subr.bf16.mxu0 0
        %1353 = vmatpush1.bf16.msra.mxu0 0
        %1354 = vmatprep.subr.bf16.mxu0 0
        %1355 = vmatpush1.bf16.msra.mxu0 0
        %1356 = vmatprep.subr.bf16.mxu0 0
        %1357 = vmatpush1.bf16.msra.mxu0 0
        %1358 = vmatprep.subr.bf16.mxu0 0
        %1359 = vmatpush1.bf16.msra.mxu0 0
        %1360 = vmatprep.subr.bf16.mxu0 0
        %1361 = vmatpush1.bf16.msra.mxu0 0
        %1362 = vmatprep.subr.bf16.mxu0 0
        %1363 = vmatpush1.bf16.msra.mxu0 0
        %1364 = vmatprep.subr.bf16.mxu0 0
        %1365 = vmatpush1.bf16.msra.mxu0 0
        %1366 = vmatprep.subr.bf16.mxu0 0
        %1367 = vmatpush1.bf16.msra.mxu0 0
        %1368 = vmatprep.subr.bf16.mxu0 0
        %1369 = vmatpush1.bf16.msra.mxu0 0
        %1370 = vmatprep.mubr.bf16.mxu0 0
        %1371 = vmatmul.mubr.bf16.gmra.mrb[0].mxu0 %v1332
        %v1372 = vpop.f32.mrb[0].mxu0
        %v1373 = vadd.f32 0.0, %v1372
        %v1374 = vpop.f32.mrb[0].mxu0
        %v1375 = vpop.f32.mrb[0].mxu0
        %v1376 = vpop.f32.mrb[0].mxu0
        %1377 = vdwg.mxu0
        %v1378 = vpack.c.bf16 %v1373, %v1373
        %v1379 = vld [vmem:[%s996] sm:$0xf]
        %v1380 = vld [vmem:[%s996 + $0x4] sm:$0xf]
        %s1381 = scalar_lea.vmem %s969, 16
        %v1382 = vld [vmem:[%s1381] sm:$0xf]
        %v1383 = vld [vmem:[%s1381 + $0x4] sm:$0xf]
        %v1384 = vld [vmem:[%s1381 + $0x8] sm:$0xf]
        %v1385 = vld [vmem:[%s1381 + $0xc] sm:$0xf]
        %s1386 = scalar_lea.vmem %s973, 1
        %v1387 = vld [vmem:[%s1386] sm:$0x1]
        %v1389 = vlaneseq
        %v1390 = vshrl.u32 %v1389, 7
        %v1391 = vsub.s32 0, %v1390
        %v1392 = vrot.slane %v1387, %v1391
        %v1398 = vunpack.c.l.b16 %v1382
        %v1399 = vunpack.c.l.b16 %v1383
        %v1400 = vunpack.c.l.b16 %v1384
        %v1401 = vunpack.c.l.b16 %v1385
        %v1402 = vpack.c.b16 %v1399, %v1398
        %v1403 = vpack.c.b16 %v1401, %v1400
        %1406 = vmatprep.subr.bf16.mxu0 0
        %1407 = vmatpush1.bf16.msra.mxu0 %v1402
        %1408 = vmatprep.subr.bf16.mxu0 0
        %1409 = vmatpush1.bf16.msra.mxu0 %v1403
        %1410 = vmatprep.subr.bf16.mxu0 0
        %1411 = vmatpush1.bf16.msra.mxu0 0
        %1412 = vmatprep.subr.bf16.mxu0 0
        %1413 = vmatpush1.bf16.msra.mxu0 0
        %1414 = vmatprep.subr.bf16.mxu0 0
        %1415 = vmatpush1.bf16.msra.mxu0 0
        %1416 = vmatprep.subr.bf16.mxu0 0
        %1417 = vmatpush1.bf16.msra.mxu0 0
        %1418 = vmatprep.subr.bf16.mxu0 0
        %1419 = vmatpush1.bf16.msra.mxu0 0
        %1420 = vmatprep.subr.bf16.mxu0 0
        %1421 = vmatpush1.bf16.msra.mxu0 0
        %1422 = vmatprep.subr.bf16.mxu0 0
        %1423 = vmatpush1.bf16.msra.mxu0 0
        %1424 = vmatprep.subr.bf16.mxu0 0
        %1425 = vmatpush1.bf16.msra.mxu0 0
        %1426 = vmatprep.subr.bf16.mxu0 0
        %1427 = vmatpush1.bf16.msra.mxu0 0
        %1428 = vmatprep.subr.bf16.mxu0 0
        %1429 = vmatpush1.bf16.msra.mxu0 0
        %1430 = vmatprep.subr.bf16.mxu0 0
        %1431 = vmatpush1.bf16.msra.mxu0 0
        %1432 = vmatprep.subr.bf16.mxu0 0
        %1433 = vmatpush1.bf16.msra.mxu0 0
        %1434 = vmatprep.subr.bf16.mxu0 0
        %1435 = vmatpush1.bf16.msra.mxu0 0
        %1436 = vmatprep.subr.bf16.mxu0 0
        %1437 = vmatpush1.bf16.msra.mxu0 0
        %1438 = vmatprep.mubr.bf16.mxu0 0
        %1439 = vmatmul.mubr.bf16.gmra.mrb[0].mxu0 %v1097
        %v1440 = vpop.f32.mrb[0].mxu0
        %v1441 = vadd.f32 %v1392, %v1440
        %v1442 = vpop.f32.mrb[0].mxu0
        %v1443 = vpop.f32.mrb[0].mxu0
        %v1444 = vpop.f32.mrb[0].mxu0
        %1445 = vdwg.mxu0
        %s1446 = scalar_lea.vmem %s978, 16
        %v1447 = vld [vmem:[%s1446] sm:$0xf]
        %v1448 = vld [vmem:[%s1446 + $0x4] sm:$0xf]
        %v1449 = vld [vmem:[%s1446 + $0x8] sm:$0xf]
        %v1450 = vld [vmem:[%s1446 + $0xc] sm:$0xf]
        %s1451 = scalar_lea.vmem %s982, 1
        %v1452 = vld [vmem:[%s1451] sm:$0x1]
        %v1454 = vlaneseq
        %v1455 = vshrl.u32 %v1454, 7
        %v1456 = vsub.s32 0, %v1455
        %v1457 = vrot.slane %v1452, %v1456
        %v1463 = vunpack.c.l.b16 %v1447
        %v1464 = vunpack.c.l.b16 %v1448
        %v1465 = vunpack.c.l.b16 %v1449
        %v1466 = vunpack.c.l.b16 %v1450
        %v1467 = vpack.c.b16 %v1464, %v1463
        %v1468 = vpack.c.b16 %v1466, %v1465
        %1471 = vmatprep.subr.bf16.mxu0 0
        %1472 = vmatpush1.bf16.msra.mxu0 %v1467
        %1473 = vmatprep.subr.bf16.mxu0 0
        %1474 = vmatpush1.bf16.msra.mxu0 %v1468
        %1475 = vmatprep.subr.bf16.mxu0 0
        %1476 = vmatpush1.bf16.msra.mxu0 0
        %1477 = vmatprep.subr.bf16.mxu0 0
        %1478 = vmatpush1.bf16.msra.mxu0 0
        %1479 = vmatprep.subr.bf16.mxu0 0
        %1480 = vmatpush1.bf16.msra.mxu0 0
        %1481 = vmatprep.subr.bf16.mxu0 0
        %1482 = vmatpush1.bf16.msra.mxu0 0
        %1483 = vmatprep.subr.bf16.mxu0 0
        %1484 = vmatpush1.bf16.msra.mxu0 0
        %1485 = vmatprep.subr.bf16.mxu0 0
        %1486 = vmatpush1.bf16.msra.mxu0 0
        %1487 = vmatprep.subr.bf16.mxu0 0
        %1488 = vmatpush1.bf16.msra.mxu0 0
        %1489 = vmatprep.subr.bf16.mxu0 0
        %1490 = vmatpush1.bf16.msra.mxu0 0
        %1491 = vmatprep.subr.bf16.mxu0 0
        %1492 = vmatpush1.bf16.msra.mxu0 0
        %1493 = vmatprep.subr.bf16.mxu0 0
        %1494 = vmatpush1.bf16.msra.mxu0 0
        %1495 = vmatprep.subr.bf16.mxu0 0
        %1496 = vmatpush1.bf16.msra.mxu0 0
        %1497 = vmatprep.subr.bf16.mxu0 0
        %1498 = vmatpush1.bf16.msra.mxu0 0
        %1499 = vmatprep.subr.bf16.mxu0 0
        %1500 = vmatpush1.bf16.msra.mxu0 0
        %1501 = vmatprep.subr.bf16.mxu0 0
        %1502 = vmatpush1.bf16.msra.mxu0 0
        %1503 = vmatprep.mubr.bf16.mxu0 0
        %1504 = vmatmul.mubr.bf16.gmra.mrb[0].mxu0 %v1163
        %v1505 = vpop.f32.mrb[0].mxu0
        %v1506 = vadd.f32 %v1457, %v1505
        %v1507 = vpop.f32.mrb[0].mxu0
        %v1508 = vpop.f32.mrb[0].mxu0
        %v1509 = vpop.f32.mrb[0].mxu0
        %1510 = vdwg.mxu0
        %s1511 = scalar_lea.vmem %s987, 16
        %v1512 = vld [vmem:[%s1511] sm:$0xf]
        %v1513 = vld [vmem:[%s1511 + $0x4] sm:$0xf]
        %v1514 = vld [vmem:[%s1511 + $0x8] sm:$0xf]
        %v1515 = vld [vmem:[%s1511 + $0xc] sm:$0xf]
        %s1516 = scalar_lea.vmem %s991, 1
        %v1517 = vld [vmem:[%s1516] sm:$0x1]
        %v1519 = vlaneseq
        %v1520 = vshrl.u32 %v1519, 7
        %v1521 = vsub.s32 0, %v1520
        %v1522 = vrot.slane %v1517, %v1521
        %v1528 = vunpack.c.l.b16 %v1512
        %v1529 = vunpack.c.l.b16 %v1513
        %v1530 = vunpack.c.l.b16 %v1514
        %v1531 = vunpack.c.l.b16 %v1515
        %v1532 = vpack.c.b16 %v1529, %v1528
        %v1533 = vpack.c.b16 %v1531, %v1530
        %1536 = vmatprep.subr.bf16.mxu0 0
        %1537 = vmatpush1.bf16.msra.mxu0 %v1532
        %1538 = vmatprep.subr.bf16.mxu0 0
        %1539 = vmatpush1.bf16.msra.mxu0 %v1533
        %1540 = vmatprep.subr.bf16.mxu0 0
        %1541 = vmatpush1.bf16.msra.mxu0 0
        %1542 = vmatprep.subr.bf16.mxu0 0
        %1543 = vmatpush1.bf16.msra.mxu0 0
        %1544 = vmatprep.subr.bf16.mxu0 0
        %1545 = vmatpush1.bf16.msra.mxu0 0
        %1546 = vmatprep.subr.bf16.mxu0 0
        %1547 = vmatpush1.bf16.msra.mxu0 0
        %1548 = vmatprep.subr.bf16.mxu0 0
        %1549 = vmatpush1.bf16.msra.mxu0 0
        %1550 = vmatprep.subr.bf16.mxu0 0
        %1551 = vmatpush1.bf16.msra.mxu0 0
        %1552 = vmatprep.subr.bf16.mxu0 0
        %1553 = vmatpush1.bf16.msra.mxu0 0
        %1554 = vmatprep.subr.bf16.mxu0 0
        %1555 = vmatpush1.bf16.msra.mxu0 0
        %1556 = vmatprep.subr.bf16.mxu0 0
        %1557 = vmatpush1.bf16.msra.mxu0 0
        %1558 = vmatprep.subr.bf16.mxu0 0
        %1559 = vmatpush1.bf16.msra.mxu0 0
        %1560 = vmatprep.subr.bf16.mxu0 0
        %1561 = vmatpush1.bf16.msra.mxu0 0
        %1562 = vmatprep.subr.bf16.mxu0 0
        %1563 = vmatpush1.bf16.msra.mxu0 0
        %1564 = vmatprep.subr.bf16.mxu0 0
        %1565 = vmatpush1.bf16.msra.mxu0 0
        %1566 = vmatprep.subr.bf16.mxu0 0
        %1567 = vmatpush1.bf16.msra.mxu0 0
        %1568 = vmatprep.mubr.bf16.mxu0 0
        %1569 = vmatmul.mubr.bf16.gmra.mrb[0].mxu0 %v1163
        %v1570 = vpop.f32.mrb[0].mxu0
        %v1571 = vadd.f32 %v1522, %v1570
        %v1572 = vpop.f32.mrb[0].mxu0
        %v1573 = vpop.f32.mrb[0].mxu0
        %v1574 = vpop.f32.mrb[0].mxu0
        %1575 = vdwg.mxu0
        %v1576 = vpack.c.bf16 %v1441, %v1441
        %v1577 = vpack.c.bf16 %v1506, %v1506
        %v1578 = vpack.c.bf16 %v1571, %v1571
        %v1580 = vsel %vm1271, %v1576, 0
        %v1583 = vsel %vm1271, %v1577, 0
        %1585 = vmatprep.subr.bf16.mxu0 0
        %1586 = vmatpush1.bf16.xpose.msra.mxu0 %v1583
        %1587 = vmatprep.subr.bf16.mxu0 0
        %1588 = vmatpush1.bf16.xpose.msra.mxu0 0
        %1589 = vmatprep.subr.bf16.mxu0 0
        %1590 = vmatpush1.bf16.xpose.msra.mxu0 0
        %1591 = vmatprep.subr.bf16.mxu0 0
        %1592 = vmatpush1.bf16.xpose.msra.mxu0 0
        %1593 = vmatprep.subr.bf16.mxu0 0
        %1594 = vmatpush1.bf16.xpose.msra.mxu0 0
        %1595 = vmatprep.subr.bf16.mxu0 0
        %1596 = vmatpush1.bf16.xpose.msra.mxu0 0
        %1597 = vmatprep.subr.bf16.mxu0 0
        %1598 = vmatpush1.bf16.xpose.msra.mxu0 0
        %1599 = vmatprep.subr.bf16.mxu0 0
        %1600 = vmatpush1.bf16.xpose.msra.mxu0 0
        %1601 = vmatprep.subr.bf16.mxu0 0
        %1602 = vmatpush1.bf16.xpose.msra.mxu0 0
        %1603 = vmatprep.subr.bf16.mxu0 0
        %1604 = vmatpush1.bf16.xpose.msra.mxu0 0
        %1605 = vmatprep.subr.bf16.mxu0 0
        %1606 = vmatpush1.bf16.xpose.msra.mxu0 0
        %1607 = vmatprep.subr.bf16.mxu0 0
        %1608 = vmatpush1.bf16.xpose.msra.mxu0 0
        %1609 = vmatprep.subr.bf16.mxu0 0
        %1610 = vmatpush1.bf16.xpose.msra.mxu0 0
        %1611 = vmatprep.subr.bf16.mxu0 0
        %1612 = vmatpush1.bf16.xpose.msra.mxu0 0
        %1613 = vmatprep.subr.bf16.mxu0 0
        %1614 = vmatpush1.bf16.xpose.msra.mxu0 0
        %1615 = vmatprep.subr.bf16.mxu0 0
        %1616 = vmatpush1.bf16.xpose.msra.mxu0 0
        %1617 = vmatprep.mubr.bf16.mxu0 0
        %1618 = vmatmul.mubr.bf16.gmra.mrb[0].mxu0 %v1580
        %v1619 = vpop.f32.mrb[0].mxu0
        %v1620 = vadd.f32 %v1072, %v1619
        %v1621 = vpop.f32.mrb[0].mxu0
        %v1622 = vpop.f32.mrb[0].mxu0
        %v1623 = vpop.f32.mrb[0].mxu0
        %1624 = vdwg.mxu0
        %v1625 = vsel %vm1318, %v1620, -inf
        %1626 = vmax.xlane.f32.xlu0 %v1625
        %v1627 = vpop.xlane.xlu0 %1626
        %v1628 = vsub.f32 %v1620, %v1627
        %v1629 = vmul.f32 %v1628, 1.442695
        %v1630 = vpow.pop %v1629
        %v1631 = vsel %vm1318, %v1630, 0.0
        %1632 = vadd.xlane.f32.xlu0 %v1631
        %v1633 = vpop.xlane.xlu0 %1632
        %v1634 = vrcp.pop %v1633
        %v1635 = vmul.f32 %v1630, %v1634
        %v1636 = vpack.c.bf16 %v1635, %v1635
        %v1638 = vsel %vm1318, %v1636, 0
        %v1641 = vsel %vm1334, %v1578, 0
        %1643 = vmatprep.subr.bf16.mxu0 0
        %1644 = vmatpush1.bf16.msra.mxu0 %v1641
        %1645 = vmatprep.subr.bf16.mxu0 0
        %1646 = vmatpush1.bf16.msra.mxu0 0
        %1647 = vmatprep.subr.bf16.mxu0 0
        %1648 = vmatpush1.bf16.msra.mxu0 0
        %1649 = vmatprep.subr.bf16.mxu0 0
        %1650 = vmatpush1.bf16.msra.mxu0 0
        %1651 = vmatprep.subr.bf16.mxu0 0
        %1652 = vmatpush1.bf16.msra.mxu0 0
        %1653 = vmatprep.subr.bf16.mxu0 0
        %1654 = vmatpush1.bf16.msra.mxu0 0
        %1655 = vmatprep.subr.bf16.mxu0 0
        %1656 = vmatpush1.bf16.msra.mxu0 0
        %1657 = vmatprep.subr.bf16.mxu0 0
        %1658 = vmatpush1.bf16.msra.mxu0 0
        %1659 = vmatprep.subr.bf16.mxu0 0
        %1660 = vmatpush1.bf16.msra.mxu0 0
        %1661 = vmatprep.subr.bf16.mxu0 0
        %1662 = vmatpush1.bf16.msra.mxu0 0
        %1663 = vmatprep.subr.bf16.mxu0 0
        %1664 = vmatpush1.bf16.msra.mxu0 0
        %1665 = vmatprep.subr.bf16.mxu0 0
        %1666 = vmatpush1.bf16.msra.mxu0 0
        %1667 = vmatprep.subr.bf16.mxu0 0
        %1668 = vmatpush1.bf16.msra.mxu0 0
        %1669 = vmatprep.subr.bf16.mxu0 0
        %1670 = vmatpush1.bf16.msra.mxu0 0
        %1671 = vmatprep.subr.bf16.mxu0 0
        %1672 = vmatpush1.bf16.msra.mxu0 0
        %1673 = vmatprep.subr.bf16.mxu0 0
        %1674 = vmatpush1.bf16.msra.mxu0 0
        %1675 = vmatprep.mubr.bf16.mxu0 0
        %1676 = vmatmul.mubr.bf16.gmra.mrb[0].mxu0 %v1638
        %v1677 = vpop.f32.mrb[0].mxu0
        %v1678 = vadd.f32 0.0, %v1677
        %v1679 = vpop.f32.mrb[0].mxu0
        %v1680 = vpop.f32.mrb[0].mxu0
        %v1681 = vpop.f32.mrb[0].mxu0
        %1682 = vdwg.mxu0
        %v1683 = vpack.c.bf16 %v1678, %v1678
        %s1684 = scalar_lea.vmem %s996, 8
        %v1685 = vld [vmem:[%s1684] sm:$0xf]
        %v1686 = vld [vmem:[%s1684 + $0x4] sm:$0xf]
        %v1689 = vunpack.c.l.b16 %v1685
        %v1690 = vunpack.c.l.b16 %v1686
        %v1691 = vpack.c.b16 %v1690, %v1689
        %v1694 = vsel %vm1271, %v1683, 0
        %1696 = vmatprep.subr.bf16.mxu0 0
        %1697 = vmatpush1.bf16.msra.mxu0 %v1691
        %1698 = vmatprep.subr.bf16.mxu0 0
        %1699 = vmatpush1.bf16.msra.mxu0 0
        %1700 = vmatprep.subr.bf16.mxu0 0
        %1701 = vmatpush1.bf16.msra.mxu0 0
        %1702 = vmatprep.subr.bf16.mxu0 0
        %1703 = vmatpush1.bf16.msra.mxu0 0
        %1704 = vmatprep.subr.bf16.mxu0 0
        %1705 = vmatpush1.bf16.msra.mxu0 0
        %1706 = vmatprep.subr.bf16.mxu0 0
        %1707 = vmatpush1.bf16.msra.mxu0 0
        %1708 = vmatprep.subr.bf16.mxu0 0
        %1709 = vmatpush1.bf16.msra.mxu0 0
        %1710 = vmatprep.subr.bf16.mxu0 0
        %1711 = vmatpush1.bf16.msra.mxu0 0
        %1712 = vmatprep.subr.bf16.mxu0 0
        %1713 = vmatpush1.bf16.msra.mxu0 0
        %1714 = vmatprep.subr.bf16.mxu0 0
        %1715 = vmatpush1.bf16.msra.mxu0 0
        %1716 = vmatprep.subr.bf16.mxu0 0
        %1717 = vmatpush1.bf16.msra.mxu0 0
        %1718 = vmatprep.subr.bf16.mxu0 0
        %1719 = vmatpush1.bf16.msra.mxu0 0
        %1720 = vmatprep.subr.bf16.mxu0 0
        %1721 = vmatpush1.bf16.msra.mxu0 0
        %1722 = vmatprep.subr.bf16.mxu0 0
        %1723 = vmatpush1.bf16.msra.mxu0 0
        %1724 = vmatprep.subr.bf16.mxu0 0
        %1725 = vmatpush1.bf16.msra.mxu0 0
        %1726 = vmatprep.subr.bf16.mxu0 0
        %1727 = vmatpush1.bf16.msra.mxu0 0
        %1728 = vmatprep.mubr.bf16.mxu0 0
        %1729 = vmatmul.mubr.bf16.gmra.mrb[0].mxu0 %v1694
        %v1730 = vpop.f32.mrb[0].mxu0
        %v1731 = vadd.f32 0.0, %v1730
        %v1732 = vpop.f32.mrb[0].mxu0
        %v1733 = vpop.f32.mrb[0].mxu0
        %v1734 = vpop.f32.mrb[0].mxu0
        %1735 = vdwg.mxu0
        %v1738 = vunpack.c.l.b16 %v1379
        %v1739 = vunpack.c.l.b16 %v1380
        %v1740 = vpack.c.b16 %v1739, %v1738
        %v1743 = vsel %vm1271, %v1378, 0
        %1745 = vmatprep.subr.bf16.mxu0 0
        %1746 = vmatpush1.bf16.msra.mxu0 %v1740
        %1747 = vmatprep.subr.bf16.mxu0 0
        %1748 = vmatpush1.bf16.msra.mxu0 0
        %1749 = vmatprep.subr.bf16.mxu0 0
        %1750 = vmatpush1.bf16.msra.mxu0 0
        %1751 = vmatprep.subr.bf16.mxu0 0
        %1752 = vmatpush1.bf16.msra.mxu0 0
        %1753 = vmatprep.subr.bf16.mxu0 0
        %1754 = vmatpush1.bf16.msra.mxu0 0
        %1755 = vmatprep.subr.bf16.mxu0 0
        %1756 = vmatpush1.bf16.msra.mxu0 0
        %1757 = vmatprep.subr.bf16.mxu0 0
        %1758 = vmatpush1.bf16.msra.mxu0 0
        %1759 = vmatprep.subr.bf16.mxu0 0
        %1760 = vmatpush1.bf16.msra.mxu0 0
        %1761 = vmatprep.subr.bf16.mxu0 0
        %1762 = vmatpush1.bf16.msra.mxu0 0
        %1763 = vmatprep.subr.bf16.mxu0 0
        %1764 = vmatpush1.bf16.msra.mxu0 0
        %1765 = vmatprep.subr.bf16.mxu0 0
        %1766 = vmatpush1.bf16.msra.mxu0 0
        %1767 = vmatprep.subr.bf16.mxu0 0
        %1768 = vmatpush1.bf16.msra.mxu0 0
        %1769 = vmatprep.subr.bf16.mxu0 0
        %1770 = vmatpush1.bf16.msra.mxu0 0
        %1771 = vmatprep.subr.bf16.mxu0 0
        %1772 = vmatpush1.bf16.msra.mxu0 0
        %1773 = vmatprep.subr.bf16.mxu0 0
        %1774 = vmatpush1.bf16.msra.mxu0 0
        %1775 = vmatprep.subr.bf16.mxu0 0
        %1776 = vmatpush1.bf16.msra.mxu0 0
        %1777 = vmatprep.mubr.bf16.mxu0 0
        %1778 = vmatmul.mubr.bf16.gmra.mrb[0].mxu0 %v1743
        %v1779 = vpop.f32.mrb[0].mxu0
        %v1780 = vadd.f32 %v1731, %v1779
        %v1781 = vpop.f32.mrb[0].mxu0
        %v1782 = vpop.f32.mrb[0].mxu0
        %v1783 = vpop.f32.mrb[0].mxu0
        %1784 = vdwg.mxu0
        %v1785 = vld [vmem:[%s999] sm:$0x1]
        %v1787 = vlaneseq
        %v1788 = vshrl.u32 %v1787, 7
        %v1789 = vsub.s32 0, %v1788
        %v1790 = vrot.slane %v1785, %v1789
        %v1792 = vadd.f32 %v1780, %v1790
        %v1793 = vadd.f32 %v1069, %v1792
        %v1794 = vld [vmem:[%s1002] sm:$0x1]
        %v1795 = vld [vmem:[%s1005] sm:$0x1]
        %v1796 = vsel %vm1041, %v1793, 0.0
        %1797 = vadd.xlane.f32.xlu0 %v1796
        %v1798 = vpop.xlane.xlu0 %1797
        %v1799 = vmul.f32 %v1798, %v1045
        %v1800 = vsub.f32 %v1793, %v1799
        %v1801 = vmul.f32 %v1800, %v1800
        %v1802 = vsel %vm1041, %v1801, 0.0
        %1803 = vadd.xlane.f32.xlu0 %v1802
        %v1804 = vpop.xlane.xlu0 %1803
        %v1805 = vmul.f32 %v1804, %v1045
        %v1806 = vadd.f32 %v1805, 1e-08
        %v1807 = vrsqrt.pop %v1806
        %v1808 = vmul.f32 %v1800, %v1807
        %v1810 = vlaneseq
        %v1811 = vshrl.u32 %v1810, 7
        %v1812 = vsub.s32 0, %v1811
        %v1813 = vrot.slane %v1794, %v1812
        %v1815 = vmul.f32 %v1808, %v1813
        %v1817 = vlaneseq
        %v1818 = vshrl.u32 %v1817, 7
        %v1819 = vsub.s32 0, %v1818
        %v1820 = vrot.slane %v1795, %v1819
        %v1822 = vadd.f32 %v1815, %v1820
        %v1823 = vpack.c.bf16 %v1822, %v1822
        %v1824 = vld [vmem:[%s1010] sm:$0xf]
        %v1825 = vld [vmem:[%s1010 + $0x4] sm:$0xf]
        %v1826 = vld [vmem:[%s1010 + $0x8] sm:$0xf]
        %v1827 = vld [vmem:[%s1010 + $0xc] sm:$0xf]
        %v1828 = vld [vmem:[%s1013] sm:$0x1]
        %v1830 = vlaneseq
        %v1831 = vshrl.u32 %v1830, 7
        %v1832 = vsub.s32 0, %v1831
        %v1833 = vrot.slane %v1828, %v1832
        %v1839 = vunpack.c.l.b16 %v1824
        %v1840 = vunpack.c.l.b16 %v1825
        %v1841 = vunpack.c.l.b16 %v1826
        %v1842 = vunpack.c.l.b16 %v1827
        %v1843 = vpack.c.b16 %v1840, %v1839
        %v1844 = vpack.c.b16 %v1842, %v1841
        %v1848 = vsel %vm1041, %v1823, 0
        %1850 = vmatprep.subr.bf16.mxu0 0
        %1851 = vmatpush1.bf16.msra.mxu0 %v1843
        %1852 = vmatprep.subr.bf16.mxu0 0
        %1853 = vmatpush1.bf16.msra.mxu0 %v1844
        %1854 = vmatprep.subr.bf16.mxu0 0
        %1855 = vmatpush1.bf16.msra.mxu0 0
        %1856 = vmatprep.subr.bf16.mxu0 0
        %1857 = vmatpush1.bf16.msra.mxu0 0
        %1858 = vmatprep.subr.bf16.mxu0 0
        %1859 = vmatpush1.bf16.msra.mxu0 0
        %1860 = vmatprep.subr.bf16.mxu0 0
        %1861 = vmatpush1.bf16.msra.mxu0 0
        %1862 = vmatprep.subr.bf16.mxu0 0
        %1863 = vmatpush1.bf16.msra.mxu0 0
        %1864 = vmatprep.subr.bf16.mxu0 0
        %1865 = vmatpush1.bf16.msra.mxu0 0
        %1866 = vmatprep.subr.bf16.mxu0 0
        %1867 = vmatpush1.bf16.msra.mxu0 0
        %1868 = vmatprep.subr.bf16.mxu0 0
        %1869 = vmatpush1.bf16.msra.mxu0 0
        %1870 = vmatprep.subr.bf16.mxu0 0
        %1871 = vmatpush1.bf16.msra.mxu0 0
        %1872 = vmatprep.subr.bf16.mxu0 0
        %1873 = vmatpush1.bf16.msra.mxu0 0
        %1874 = vmatprep.subr.bf16.mxu0 0
        %1875 = vmatpush1.bf16.msra.mxu0 0
        %1876 = vmatprep.subr.bf16.mxu0 0
        %1877 = vmatpush1.bf16.msra.mxu0 0
        %1878 = vmatprep.subr.bf16.mxu0 0
        %1879 = vmatpush1.bf16.msra.mxu0 0
        %1880 = vmatprep.subr.bf16.mxu0 0
        %1881 = vmatpush1.bf16.msra.mxu0 0
        %1882 = vmatprep.mubr.bf16.mxu0 0
        %1883 = vmatmul.mubr.bf16.gmra.mrb[0].mxu0 %v1848
        %v1884 = vpop.f32.mrb[0].mxu0
        %v1885 = vadd.f32 %v1833, %v1884
        %v1886 = vpop.f32.mrb[0].mxu0
        %v1887 = vpop.f32.mrb[0].mxu0
        %v1888 = vpop.f32.mrb[0].mxu0
        %1889 = vdwg.mxu0
        %v1890 = vmax.f32 %v1885, 0.0
        %v1891 = vpack.c.bf16 %v1890, %v1890
        %v1892 = vld [vmem:[%s1018] sm:$0xf]
        %v1893 = vld [vmem:[%s1018 + $0x4] sm:$0xf]
        %v1894 = vld [vmem:[%s1018 + $0x8] sm:$0xf]
        %v1895 = vld [vmem:[%s1018 + $0xc] sm:$0xf]
        %v1896 = vld [vmem:[%s1021] sm:$0x1]
        %v1898 = vlaneseq
        %v1899 = vshrl.u32 %v1898, 7
        %v1900 = vsub.s32 0, %v1899
        %v1901 = vrot.slane %v1896, %v1900
        %v1907 = vunpack.c.l.b16 %v1892
        %v1908 = vunpack.c.l.b16 %v1893
        %v1909 = vunpack.c.l.b16 %v1894
        %v1910 = vunpack.c.l.b16 %v1895
        %v1911 = vpack.c.b16 %v1908, %v1907
        %v1912 = vpack.c.b16 %v1910, %v1909
        %v1916 = vsel %vm1041, %v1891, 0
        %1918 = vmatprep.subr.bf16.mxu0 0
        %1919 = vmatpush1.bf16.msra.mxu0 %v1911
        %1920 = vmatprep.subr.bf16.mxu0 0
        %1921 = vmatpush1.bf16.msra.mxu0 %v1912
        %1922 = vmatprep.subr.bf16.mxu0 0
        %1923 = vmatpush1.bf16.msra.mxu0 0
        %1924 = vmatprep.subr.bf16.mxu0 0
        %1925 = vmatpush1.bf16.msra.mxu0 0
        %1926 = vmatprep.subr.bf16.mxu0 0
        %1927 = vmatpush1.bf16.msra.mxu0 0
        %1928 = vmatprep.subr.bf16.mxu0 0
        %1929 = vmatpush1.bf16.msra.mxu0 0
        %1930 = vmatprep.subr.bf16.mxu0 0
        %1931 = vmatpush1.bf16.msra.mxu0 0
        %1932 = vmatprep.subr.bf16.mxu0 0
        %1933 = vmatpush1.bf16.msra.mxu0 0
        %1934 = vmatprep.subr.bf16.mxu0 0
        %1935 = vmatpush1.bf16.msra.mxu0 0
        %1936 = vmatprep.subr.bf16.mxu0 0
        %1937 = vmatpush1.bf16.msra.mxu0 0
        %1938 = vmatprep.subr.bf16.mxu0 0
        %1939 = vmatpush1.bf16.msra.mxu0 0
        %1940 = vmatprep.subr.bf16.mxu0 0
        %1941 = vmatpush1.bf16.msra.mxu0 0
        %1942 = vmatprep.subr.bf16.mxu0 0
        %1943 = vmatpush1.bf16.msra.mxu0 0
        %1944 = vmatprep.subr.bf16.mxu0 0
        %1945 = vmatpush1.bf16.msra.mxu0 0
        %1946 = vmatprep.subr.bf16.mxu0 0
        %1947 = vmatpush1.bf16.msra.mxu0 0
        %1948 = vmatprep.subr.bf16.mxu0 0
        %1949 = vmatpush1.bf16.msra.mxu0 0
        %1950 = vmatprep.mubr.bf16.mxu0 0
        %1951 = vmatmul.mubr.bf16.gmra.mrb[0].mxu0 %v1916
        %v1952 = vpop.f32.mrb[0].mxu0
        %v1953 = vadd.f32 %v1901, %v1952
        %v1954 = vpop.f32.mrb[0].mxu0
        %v1955 = vpop.f32.mrb[0].mxu0
        %v1956 = vpop.f32.mrb[0].mxu0
        %1957 = vdwg.mxu0
        %v1958 = vadd.f32 %v1953, %v1822
        %1959 = vst.msk [vmem:[#allocation2] sm:$0xff] %vm1041, %v1958
        %p1960 = scmp.eq.s32.totalorder %s46, 1
        // Predicated region
        $region113: #{sasrec_forward.1} parent=107 // pred_check
          %p1961 = pneg %p1960
        $region114: #{sasrec_forward.1} parent=107 // pred_check_branch
          %1963 = sbr.rel (%p1961) target = $region116
        $region115: #{sasrec_forward.1} parent=107 // pred_region
          %v1964 = vld [vmem:[%s18] sm:$0x1]
          %v1965 = vld [vmem:[%s19] sm:$0x1]
          %v1966 = vsel %vm1041, %v1958, 0.0
          %1967 = vadd.xlane.f32.xlu0 %v1966
          %v1968 = vpop.xlane.xlu0 %1967
          %v1969 = vmul.f32 %v1968, %v1045
          %v1970 = vsub.f32 %v1958, %v1969
          %v1971 = vmul.f32 %v1970, %v1970
          %v1972 = vsel %vm1041, %v1971, 0.0
          %1973 = vadd.xlane.f32.xlu0 %v1972
          %v1974 = vpop.xlane.xlu0 %1973
          %v1975 = vmul.f32 %v1974, %v1045
          %v1976 = vadd.f32 %v1975, 1e-08
          %v1977 = vrsqrt.pop %v1976
          %v1978 = vmul.f32 %v1970, %v1977
          %v1980 = vlaneseq
          %v1981 = vshrl.u32 %v1980, 7
          %v1982 = vsub.s32 0, %v1981
          %v1983 = vrot.slane %v1964, %v1982
          %v1985 = vmul.f32 %v1978, %v1983
          %v1987 = vlaneseq
          %v1988 = vshrl.u32 %v1987, 7
          %v1989 = vsub.s32 0, %v1988
          %v1990 = vrot.slane %v1965, %v1989
          %v1992 = vadd.f32 %v1985, %v1990
          %v1993 = vld [vmem:[%s1025] sm:$0xff]
          %v1994 = vmul.f32 %v1992, %v1993
          %v1995 = vsel %vm1041, %v1994, 0.0
          %1996 = vadd.xlane.f32.xlu0 %v1995
          %v1997 = vpop.xlane.xlu0 %1996
          %v1999 = vlaneseq
          %v2000 = vand.u32 %v1999, 127
          %v2001 = vlaneseq
          %v2002 = vshrl.u32 %v2001, 7
          %v2003 = vsub.s32 %v2000, %v2002
          %v2004 = vrot.slane %v1997, %v2003
          %vm2006 = vcmask 57344
          %2007 = vst.msk [vmem:[%s948] sm:$0x1] %vm2006, %v2004
          %v2008 = vld [vmem:[%s1029] sm:$0xff]
          %v2009 = vmul.f32 %v1992, %v2008
          %v2010 = vsel %vm1041, %v2009, 0.0
          %2011 = vadd.xlane.f32.xlu0 %v2010
          %v2012 = vpop.xlane.xlu0 %2011
          %v2014 = vlaneseq
          %v2015 = vshrl.u32 %v2014, 7
          %v2016 = vsub.s32 %v2000, %v2015
          %v2017 = vrot.slane %v2012, %v2016
          %2019 = vst.msk [vmem:[%s954] sm:$0x1] %vm2006, %v2017
        $region116: #{sasrec_forward.1} parent=107 // pred_fallthru
          _
        %s2020 = sand.u32 %s618, 1
        %s2021 = scalar_lea.sflag [#allocation4], %s2020
        %s2022 = sand.u32 %s618, 1
        %s2023 = scalar_lea.vmem [#allocation3], %s2022
        %s2024 = sand.u32 %s644, 1
        %s2025 = scalar_lea.sflag [#allocation6], %s2024
        %s2026 = sand.u32 %s644, 1
        %s2027 = scalar_lea.vmem [#allocation5], %s2026
        // Predicated region
        $region117: #{sasrec_forward.1} parent=107 // pred_check
          %p2028 = pneg %p628
        $region118: #{sasrec_forward.1} parent=107 // pred_check_branch
          %2030 = sbr.rel (%p2028) target = $region120
        $region119: #{sasrec_forward.1} parent=107 // pred_region
          %s2032 = ssub.s32 16, 16
          %2033 = vsyncadd %s2021, %s2032
          %s2034 = smul.addr %s45, 16
          %s2035 = scalar_lea.hbm %s22, %s2034
          %s2037 = sshll.u32 %s2023, 4
          %s2038 = int_to_ptr.vmem [resolvable:$true] %s2037
          %2040 = dma.vmem_to_hbm [thread:$0]  %s2038, 16, %s2035, %s2021
        $region120: #{sasrec_forward.1} parent=107 // pred_fallthru
          _
        // Predicated region
        $region121: #{sasrec_forward.1} parent=107 // pred_check
          %p2041 = pneg %p654
        $region122: #{sasrec_forward.1} parent=107 // pred_check_branch
          %2043 = sbr.rel (%p2041) target = $region124
        $region123: #{sasrec_forward.1} parent=107 // pred_region
          %s2045 = ssub.s32 16, 16
          %2046 = vsyncadd %s2025, %s2045
          %s2047 = smul.addr %s45, 16
          %s2048 = scalar_lea.hbm %s23, %s2047
          %s2050 = sshll.u32 %s2027, 4
          %s2051 = int_to_ptr.vmem [resolvable:$true] %s2050
          %2053 = dma.vmem_to_hbm [thread:$0]  %s2051, 16, %s2048, %s2025
        $region124: #{sasrec_forward.1} parent=107 // pred_fallthru
          _
      $region108: #{sasrec_forward.1} parent=5 // pred_fallthru
        _
      %p2054 = scmp.le.s32.totalorder 2, %s36
      // Predicated region
      $region125: #{sasrec_forward.1} parent=5 // pred_check
        %p2055 = pneg %p2054
      $region126: #{sasrec_forward.1} parent=5 // pred_check_branch
        %2057 = sbr.rel (%p2055) target = $region128
      $region127: #{sasrec_forward.1} parent=5 // pred_region
        %s2058 = ssub.s32 %s36, 2
        // Predicated region
        $region129: #{sasrec_forward.1} parent=127 // pred_check
          %p2059 = pneg %p634
        $region130: #{sasrec_forward.1} parent=127 // pred_check_branch
          %2061 = sbr.rel (%p2059) target = $region132
        $region131: #{sasrec_forward.1} parent=127 // pred_region
          %s2062 = sand.u32 %s619, 1
          %s2063 = scalar_lea.sflag [#allocation4], %s2062
          %s2064 = sand.u32 %s619, 1
          %s2065 = scalar_lea.vmem [#allocation3], %s2064
          %2066 = dma.done %s2063, 16
        $region132: #{sasrec_forward.1} parent=127 // pred_fallthru
          _
        // Predicated region
        $region133: #{sasrec_forward.1} parent=127 // pred_check
          %p2067 = pneg %p660
        $region134: #{sasrec_forward.1} parent=127 // pred_check_branch
          %2069 = sbr.rel (%p2067) target = $region136
        $region135: #{sasrec_forward.1} parent=127 // pred_region
          %s2070 = sand.u32 %s645, 1
          %s2071 = scalar_lea.sflag [#allocation6], %s2070
          %s2072 = sand.u32 %s645, 1
          %s2073 = scalar_lea.vmem [#allocation5], %s2072
          %2074 = dma.done %s2071, 16
        $region136: #{sasrec_forward.1} parent=127 // pred_fallthru
          _
      $region128: #{sasrec_forward.1} parent=5 // pred_fallthru
        _
    $region6: #{sasrec_forward.1} parent=1 // loop_footer
      %s40 = sadd.s32 1, %s36
    $region7: #{sasrec_forward.1} parent=1 // loop_footer_branch
      %35 = sbr.rel target = $region3
    $region8: #{sasrec_forward.1} parent=1 // loop_exit
      _
    %2075 = vsyncpa [#allocation4], 1
    %s2076 = scalar_lea.sflag [#allocation4], 1
    %2077 = vsyncpa %s2076, 1
    %2078 = vsyncpa [#allocation6], 1
    %s2079 = scalar_lea.sflag [#allocation6], 1
    %2080 = vsyncpa %s2079, 1

</llo_original>
